<compile_context>
chip_gen: v5e
topology: v5e:2x2
jax: 0.10.0
libtpu: 0.0.40
codegen_flags: <defaults>
</compile_context>

<pallas_src>
import jax
import jax.numpy as jnp
from jax.experimental import pallas as pl
from jax.experimental.pallas import tpu as pltpu  # noqa: F401  (kept for TPU-specific tuning hooks)


def _mul_conv1x1_kernel(w_ref, s_ref, x_ref, o_ref):
    # w_ref: (Cout, Cin)  f32 1x1-conv weight
    # s_ref: (1,    Cin)  f32 per-channel gate (broadcasts over Cout sublanes)
    # x_ref: (Cin,  HW)   f32 activations, NCHW flattened (zero-cost reshape)
    # o_ref: (Cout, HW)   f32 output, already in NCHW order
    #
    # Fold diag(s) into the weight in f32, then cast once to bf16 for the MXU.
    w_gated = (w_ref[...] * s_ref[...]).astype(jnp.bfloat16)
    x_b = x_ref[...].astype(jnp.bfloat16)
    o_ref[...] = jnp.dot(
        w_gated, x_b, preferred_element_type=jnp.float32
    ).astype(o_ref.dtype)  # one bf16 MXU matmul, f32 accumulation


def mul_conv2d_1x1(x_nchw, scale_nc11, weight_oihw):
    """x_nchw: (N, Cin, H, W); scale_nc11: (N, Cin, 1, 1); weight_oihw: (Cout, Cin, 1, 1).
    Returns (N, Cout, H, W).  Folding the gate into the weight assumes N == 1
    (which is what the module spec uses)."""
    N, Cin, H, W = x_nchw.shape
    Cout = weight_oihw.shape[0]
    assert N == 1, "per-sample gate folded into the weight requires N == 1"
    HW = H * W

    # Zero-cost reshapes only (no transposes, no dtype converts in the wrapper).
    x_mat = x_nchw.reshape(Cin, HW)
    s_mat = scale_nc11.reshape(1, Cin)
    w_mat = weight_oihw.reshape(Cout, Cin)

    itemsize = 4  # f32 inputs and f32 output
    cost = pl.CostEstimate(
        flops=2 * Cout * Cin * HW,
        transcendentals=0,
        bytes_accessed=(x_mat.size + s_mat.size + w_mat.size + Cout * HW) * itemsize,
    )

    out_mat = pl.pallas_call(
        _mul_conv1x1_kernel,
        out_shape=jax.ShapeDtypeStruct((Cout, HW), x_nchw.dtype),
        # ~2 MB total: a single full-extent block (no grid).  Full-array block
        # shapes make the non-(8,128)-aligned dims (1200 / 200 / 196) legal.
        in_specs=[
            pl.BlockSpec((Cout, Cin), lambda: (0, 0)),
            pl.BlockSpec((1, Cin), lambda: (0, 0)),
            pl.BlockSpec((Cin, HW), lambda: (0, 0)),
        ],
        out_specs=pl.BlockSpec((Cout, HW), lambda: (0, 0)),
        cost_estimate=cost,
    )(w_mat, s_mat, x_mat)

    return out_mat.reshape(N, Cout, H, W)


if __name__ == "__main__":
    key = jax.random.PRNGKey(0)
    k1, k2, k3 = jax.random.split(key, 3)

    N, Cin, Cout, H, W = 1, 1200, 200, 14, 14

    x418 = jax.random.normal(k1, (N, Cin, H, W), dtype=jnp.float32)
    x423 = jax.random.normal(k2, (N, Cin, 1, 1), dtype=jnp.float32)
    # Deterministic conv weight init (kaiming-ish scaling for a 1x1 conv).
    weight = jax.random.normal(k3, (Cout, Cin, 1, 1), dtype=jnp.float32) * (
        1.0 / jnp.sqrt(Cin)
    )

    out = mul_conv2d_1x1(x418, x423, weight)
    out = jax.block_until_ready(out)

    # Reference check in plain JAX (f32 math, no Pallas).
    ref = jnp.einsum("nchw,oc->nohw", x418 * x423, weight.reshape(Cout, Cin))
    assert out.shape == (N, Cout, H, W), out.shape
    max_err = float(jnp.max(jnp.abs(out - ref)))
    # bf16 MXU inputs (single rounding) with f32 accumulation.
    assert jnp.allclose(out, ref, atol=5e-2, rtol=5e-2), max_err

    print("KERNEL_OK")
</pallas_src>

<mosaic_0001>
module attributes {stable_mosaic.version = 11 : i64} {
  func.func @_mul_conv1x1_kernel(%arg0: memref<200x1200xf32, #tpu.memory_space<vmem>>, %arg1: memref<1x1200xf32, #tpu.memory_space<vmem>>, %arg2: memref<1200x196xf32, #tpu.memory_space<vmem>>, %arg3: memref<200x196xf32, #tpu.memory_space<vmem>>) attributes {dimension_semantics = [], scalar_prefetch = 0 : i64, scratch_operands = 0 : i64, tpu.core_type = #tpu.core_type<tc>} {
    %c0 = arith.constant 0 : index
    %c0_0 = arith.constant 0 : index
    %0 = vector.load %arg0[%c0, %c0_0] : memref<200x1200xf32, #tpu.memory_space<vmem>>, vector<200x1200xf32>
    %c0_1 = arith.constant 0 : index
    %c0_2 = arith.constant 0 : index
    %1 = vector.load %arg1[%c0_1, %c0_2] : memref<1x1200xf32, #tpu.memory_space<vmem>>, vector<1x1200xf32>
    %2 = vector.broadcast %1 : vector<1x1200xf32> to vector<200x1200xf32>
    %3 = arith.mulf %0, %2 : vector<200x1200xf32>
    %4 = arith.truncf %3 : vector<200x1200xf32> to vector<200x1200xbf16>
    %c0_3 = arith.constant 0 : index
    %c0_4 = arith.constant 0 : index
    %5 = vector.load %arg2[%c0_3, %c0_4] : memref<1200x196xf32, #tpu.memory_space<vmem>>, vector<1200x196xf32>
    %6 = arith.truncf %5 : vector<1200x196xf32> to vector<1200x196xbf16>
    %cst = arith.constant dense<0.000000e+00> : vector<200x196xf32>
    %7 = tpu.matmul %4, %6, %cst {dimension_numbers = #tpu.dot_dimension_numbers<[1], [0], [0], [1], [0, 0, 1, 1], [], []>} : vector<200x1200xbf16>, vector<1200x196xbf16>, vector<200x196xf32> -> vector<200x196xf32>
    %c0_5 = arith.constant 0 : index
    %c0_6 = arith.constant 0 : index
    %8 = vector.load %arg3[%c0_5, %c0_6] : memref<200x196xf32, #tpu.memory_space<vmem>>, vector<200x196xf32>
    tpu.vector_store %arg3[%c0_5, %c0_6], %7 {strides = array<i32>} : memref<200x196xf32, #tpu.memory_space<vmem>>, vector<200x196xf32>,
    return
  }
}

</mosaic_0001>

<llo_original>
// kernel: tpu_custom_call.1
$region0: #{tpu_custom_call.1}
  #allocation0 [shape = 'u32[]', space=smem, size = 0x4, offset = 0x4, fixed_abs, tag = 'smem constant byte address 0x4 - core index']
  #allocation1 [shape = 'u32[72,128]{1,0:T(1,128)}', space=vmem, size = 0x9000, scoped, tag = 'internal scratch']
  %s0 = inlined_call_operand.vmem [shape: f32[200,1200], index: 0, kind: input, shape index: {}]
  %s1 = inlined_call_operand.vmem [shape: f32[1,1200], index: 1, kind: input, shape index: {}]
  %s2 = inlined_call_operand.vmem [shape: f32[1200,196], index: 2, kind: input, shape index: {}]
  %s3 = inlined_call_operand.hbm [shape: f32[200,196], index: 3, kind: output, shape index: {}]
  %s4 = sld [smem:[#allocation0]]
  $region22: #{tpu_custom_call.1} parent=0
    _
  %s6 = ssub.s32 1, %s4
  %s7 = scalar_select 0, %s6, %s4
  $region1: #{tpu_custom_call.1} parent=0
    #allocation2 [shape = 'u8[204800]{0}', space=vmem, size = 0x32000, scoped, tag = 'output window, operand 0, single buffered']
    #allocation3 [shape = 's32[1]{0}', space=sflag, size = 0x4, scoped, tag = 'scoped memory for tpu_custom_call.1']
    %8 = vsyncpa [#allocation3], 0
    // Predicated region
    $region2: #{tpu_custom_call.1} parent=1 // pred_check
      _
    $region3: #{tpu_custom_call.1} parent=1 // pred_check_branch
      %10 = sbr.rel (0) target = $region5
    $region4: #{tpu_custom_call.1} parent=1 // pred_region
      _
    $region5: #{tpu_custom_call.1} parent=1 // pred_fallthru
      _
    // Predicated region
    $region6: #{tpu_custom_call.1} parent=1 // pred_check
      _
    $region7: #{tpu_custom_call.1} parent=1 // pred_check_branch
      %12 = sbr.rel (0) target = $region9
    $region8: #{tpu_custom_call.1} parent=1 // pred_region
      _
    $region9: #{tpu_custom_call.1} parent=1 // pred_fallthru
      _
    // Predicated region
    $region10: #{tpu_custom_call.1} parent=1 // pred_check
      _
    $region11: #{tpu_custom_call.1} parent=1 // pred_check_branch
      %14 = sbr.rel (0) target = $region13
    $region12: #{tpu_custom_call.1} parent=1 // pred_region
      _
    $region13: #{tpu_custom_call.1} parent=1 // pred_fallthru
      _
    %v16 = vld [vmem:[%s0] sm:$0xff]
    %v17 = vld [vmem:[%s0 + $0x8] sm:$0xff]
    %v18 = vld [vmem:[%s0 + $0x10] sm:$0xff]
    %v19 = vld [vmem:[%s0 + $0x18] sm:$0xff]
    %v20 = vld [vmem:[%s0 + $0x20] sm:$0xff]
    %v21 = vld [vmem:[%s0 + $0x28] sm:$0xff]
    %v22 = vld [vmem:[%s0 + $0x30] sm:$0xff]
    %v23 = vld [vmem:[%s0 + $0x38] sm:$0xff]
    %v24 = vld [vmem:[%s0 + $0x40] sm:$0xff]
    %v25 = vld [vmem:[%s0 + $0x48] sm:$0xff]
    %v26 = vld [vmem:[%s0 + $0x50] sm:$0xff]
    %v27 = vld [vmem:[%s0 + $0x58] sm:$0xff]
    %v28 = vld [vmem:[%s0 + $0x60] sm:$0xff]
    %v29 = vld [vmem:[%s0 + $0x68] sm:$0xff]
    %v30 = vld [vmem:[%s0 + $0x70] sm:$0xff]
    %v31 = vld [vmem:[%s0 + $0x78] sm:$0xff]
    %v32 = vld [vmem:[%s0 + $0x80] sm:$0xff]
    %v33 = vld [vmem:[%s0 + $0x88] sm:$0xff]
    %v34 = vld [vmem:[%s0 + $0x90] sm:$0xff]
    %v35 = vld [vmem:[%s0 + $0x98] sm:$0xff]
    %v36 = vld [vmem:[%s0 + $0xa0] sm:$0xff]
    %v37 = vld [vmem:[%s0 + $0xa8] sm:$0xff]
    %v38 = vld [vmem:[%s0 + $0xb0] sm:$0xff]
    %v39 = vld [vmem:[%s0 + $0xb8] sm:$0xff]
    %v40 = vld [vmem:[%s0 + $0xc0] sm:$0xff]
    %v41 = vld [vmem:[%s0 + $0xc8] sm:$0xff]
    %v42 = vld [vmem:[%s0 + $0xd0] sm:$0xff]
    %v43 = vld [vmem:[%s0 + $0xd8] sm:$0xff]
    %v44 = vld [vmem:[%s0 + $0xe0] sm:$0xff]
    %v45 = vld [vmem:[%s0 + $0xe8] sm:$0xff]
    %v46 = vld [vmem:[%s0 + $0xf0] sm:$0xff]
    %v47 = vld [vmem:[%s0 + $0xf8] sm:$0xff]
    %v48 = vld [vmem:[%s0 + $0x100] sm:$0xff]
    %v49 = vld [vmem:[%s0 + $0x108] sm:$0xff]
    %v50 = vld [vmem:[%s0 + $0x110] sm:$0xff]
    %v51 = vld [vmem:[%s0 + $0x118] sm:$0xff]
    %v52 = vld [vmem:[%s0 + $0x120] sm:$0xff]
    %v53 = vld [vmem:[%s0 + $0x128] sm:$0xff]
    %v54 = vld [vmem:[%s0 + $0x130] sm:$0xff]
    %v55 = vld [vmem:[%s0 + $0x138] sm:$0xff]
    %v56 = vld [vmem:[%s0 + $0x140] sm:$0xff]
    %v57 = vld [vmem:[%s0 + $0x148] sm:$0xff]
    %v58 = vld [vmem:[%s0 + $0x150] sm:$0xff]
    %v59 = vld [vmem:[%s0 + $0x158] sm:$0xff]
    %v60 = vld [vmem:[%s0 + $0x160] sm:$0xff]
    %v61 = vld [vmem:[%s0 + $0x168] sm:$0xff]
    %v62 = vld [vmem:[%s0 + $0x170] sm:$0xff]
    %v63 = vld [vmem:[%s0 + $0x178] sm:$0xff]
    %v64 = vld [vmem:[%s0 + $0x180] sm:$0xff]
    %v65 = vld [vmem:[%s0 + $0x188] sm:$0xff]
    %v66 = vld [vmem:[%s0 + $0x190] sm:$0xff]
    %v67 = vld [vmem:[%s0 + $0x198] sm:$0xff]
    %v68 = vld [vmem:[%s0 + $0x1a0] sm:$0xff]
    %v69 = vld [vmem:[%s0 + $0x1a8] sm:$0xff]
    %v70 = vld [vmem:[%s0 + $0x1b0] sm:$0xff]
    %v71 = vld [vmem:[%s0 + $0x1b8] sm:$0xff]
    %v72 = vld [vmem:[%s0 + $0x1c0] sm:$0xff]
    %v73 = vld [vmem:[%s0 + $0x1c8] sm:$0xff]
    %v74 = vld [vmem:[%s0 + $0x1d0] sm:$0xff]
    %v75 = vld [vmem:[%s0 + $0x1d8] sm:$0xff]
    %v76 = vld [vmem:[%s0 + $0x1e0] sm:$0xff]
    %v77 = vld [vmem:[%s0 + $0x1e8] sm:$0xff]
    %v78 = vld [vmem:[%s0 + $0x1f0] sm:$0xff]
    %v79 = vld [vmem:[%s0 + $0x1f8] sm:$0xff]
    %v80 = vld [vmem:[%s0 + $0x200] sm:$0xff]
    %v81 = vld [vmem:[%s0 + $0x208] sm:$0xff]
    %v82 = vld [vmem:[%s0 + $0x210] sm:$0xff]
    %v83 = vld [vmem:[%s0 + $0x218] sm:$0xff]
    %v84 = vld [vmem:[%s0 + $0x220] sm:$0xff]
    %v85 = vld [vmem:[%s0 + $0x228] sm:$0xff]
    %v86 = vld [vmem:[%s0 + $0x230] sm:$0xff]
    %v87 = vld [vmem:[%s0 + $0x238] sm:$0xff]
    %v88 = vld [vmem:[%s0 + $0x240] sm:$0xff]
    %v89 = vld [vmem:[%s0 + $0x248] sm:$0xff]
    %v90 = vld [vmem:[%s0 + $0x250] sm:$0xff]
    %v91 = vld [vmem:[%s0 + $0x258] sm:$0xff]
    %v92 = vld [vmem:[%s0 + $0x260] sm:$0xff]
    %v93 = vld [vmem:[%s0 + $0x268] sm:$0xff]
    %v94 = vld [vmem:[%s0 + $0x270] sm:$0xff]
    %v95 = vld [vmem:[%s0 + $0x278] sm:$0xff]
    %v96 = vld [vmem:[%s0 + $0x280] sm:$0xff]
    %v97 = vld [vmem:[%s0 + $0x288] sm:$0xff]
    %v98 = vld [vmem:[%s0 + $0x290] sm:$0xff]
    %v99 = vld [vmem:[%s0 + $0x298] sm:$0xff]
    %v100 = vld [vmem:[%s0 + $0x2a0] sm:$0xff]
    %v101 = vld [vmem:[%s0 + $0x2a8] sm:$0xff]
    %v102 = vld [vmem:[%s0 + $0x2b0] sm:$0xff]
    %v103 = vld [vmem:[%s0 + $0x2b8] sm:$0xff]
    %v104 = vld [vmem:[%s0 + $0x2c0] sm:$0xff]
    %v105 = vld [vmem:[%s0 + $0x2c8] sm:$0xff]
    %v106 = vld [vmem:[%s0 + $0x2d0] sm:$0xff]
    %v107 = vld [vmem:[%s0 + $0x2d8] sm:$0xff]
    %v108 = vld [vmem:[%s0 + $0x2e0] sm:$0xff]
    %v109 = vld [vmem:[%s0 + $0x2e8] sm:$0xff]
    %v110 = vld [vmem:[%s0 + $0x2f0] sm:$0xff]
    %v111 = vld [vmem:[%s0 + $0x2f8] sm:$0xff]
    %v112 = vld [vmem:[%s0 + $0x300] sm:$0xff]
    %v113 = vld [vmem:[%s0 + $0x308] sm:$0xff]
    %v114 = vld [vmem:[%s0 + $0x310] sm:$0xff]
    %v115 = vld [vmem:[%s0 + $0x318] sm:$0xff]
    %v116 = vld [vmem:[%s0 + $0x320] sm:$0xff]
    %v117 = vld [vmem:[%s0 + $0x328] sm:$0xff]
    %v118 = vld [vmem:[%s0 + $0x330] sm:$0xff]
    %v119 = vld [vmem:[%s0 + $0x338] sm:$0xff]
    %v120 = vld [vmem:[%s0 + $0x340] sm:$0xff]
    %v121 = vld [vmem:[%s0 + $0x348] sm:$0xff]
    %v122 = vld [vmem:[%s0 + $0x350] sm:$0xff]
    %v123 = vld [vmem:[%s0 + $0x358] sm:$0xff]
    %v124 = vld [vmem:[%s0 + $0x360] sm:$0xff]
    %v125 = vld [vmem:[%s0 + $0x368] sm:$0xff]
    %v126 = vld [vmem:[%s0 + $0x370] sm:$0xff]
    %v127 = vld [vmem:[%s0 + $0x378] sm:$0xff]
    %v128 = vld [vmem:[%s0 + $0x380] sm:$0xff]
    %v129 = vld [vmem:[%s0 + $0x388] sm:$0xff]
    %v130 = vld [vmem:[%s0 + $0x390] sm:$0xff]
    %v131 = vld [vmem:[%s0 + $0x398] sm:$0xff]
    %v132 = vld [vmem:[%s0 + $0x3a0] sm:$0xff]
    %v133 = vld [vmem:[%s0 + $0x3a8] sm:$0xff]
    %v134 = vld [vmem:[%s0 + $0x3b0] sm:$0xff]
    %v135 = vld [vmem:[%s0 + $0x3b8] sm:$0xff]
    %v136 = vld [vmem:[%s0 + $0x3c0] sm:$0xff]
    %v137 = vld [vmem:[%s0 + $0x3c8] sm:$0xff]
    %v138 = vld [vmem:[%s0 + $0x3d0] sm:$0xff]
    %v139 = vld [vmem:[%s0 + $0x3d8] sm:$0xff]
    %v140 = vld [vmem:[%s0 + $0x3e0] sm:$0xff]
    %v141 = vld [vmem:[%s0 + $0x3e8] sm:$0xff]
    %v142 = vld [vmem:[%s0 + $0x3f0] sm:$0xff]
    %v143 = vld [vmem:[%s0 + $0x3f8] sm:$0xff]
    %v144 = vld [vmem:[%s0 + $0x400] sm:$0xff]
    %v145 = vld [vmem:[%s0 + $0x408] sm:$0xff]
    %v146 = vld [vmem:[%s0 + $0x410] sm:$0xff]
    %v147 = vld [vmem:[%s0 + $0x418] sm:$0xff]
    %v148 = vld [vmem:[%s0 + $0x420] sm:$0xff]
    %v149 = vld [vmem:[%s0 + $0x428] sm:$0xff]
    %v150 = vld [vmem:[%s0 + $0x430] sm:$0xff]
    %v151 = vld [vmem:[%s0 + $0x438] sm:$0xff]
    %v152 = vld [vmem:[%s0 + $0x440] sm:$0xff]
    %v153 = vld [vmem:[%s0 + $0x448] sm:$0xff]
    %v154 = vld [vmem:[%s0 + $0x450] sm:$0xff]
    %v155 = vld [vmem:[%s0 + $0x458] sm:$0xff]
    %v156 = vld [vmem:[%s0 + $0x460] sm:$0xff]
    %v157 = vld [vmem:[%s0 + $0x468] sm:$0xff]
    %v158 = vld [vmem:[%s0 + $0x470] sm:$0xff]
    %v159 = vld [vmem:[%s0 + $0x478] sm:$0xff]
    %v160 = vld [vmem:[%s0 + $0x480] sm:$0xff]
    %v161 = vld [vmem:[%s0 + $0x488] sm:$0xff]
    %v162 = vld [vmem:[%s0 + $0x490] sm:$0xff]
    %v163 = vld [vmem:[%s0 + $0x498] sm:$0xff]
    %v164 = vld [vmem:[%s0 + $0x4a0] sm:$0xff]
    %v165 = vld [vmem:[%s0 + $0x4a8] sm:$0xff]
    %v166 = vld [vmem:[%s0 + $0x4b0] sm:$0xff]
    %v167 = vld [vmem:[%s0 + $0x4b8] sm:$0xff]
    %v168 = vld [vmem:[%s0 + $0x4c0] sm:$0xff]
    %v169 = vld [vmem:[%s0 + $0x4c8] sm:$0xff]
    %v170 = vld [vmem:[%s0 + $0x4d0] sm:$0xff]
    %v171 = vld [vmem:[%s0 + $0x4d8] sm:$0xff]
    %v172 = vld [vmem:[%s0 + $0x4e0] sm:$0xff]
    %v173 = vld [vmem:[%s0 + $0x4e8] sm:$0xff]
    %v174 = vld [vmem:[%s0 + $0x4f0] sm:$0xff]
    %v175 = vld [vmem:[%s0 + $0x4f8] sm:$0xff]
    %v176 = vld [vmem:[%s0 + $0x500] sm:$0xff]
    %v177 = vld [vmem:[%s0 + $0x508] sm:$0xff]
    %v178 = vld [vmem:[%s0 + $0x510] sm:$0xff]
    %v179 = vld [vmem:[%s0 + $0x518] sm:$0xff]
    %v180 = vld [vmem:[%s0 + $0x520] sm:$0xff]
    %v181 = vld [vmem:[%s0 + $0x528] sm:$0xff]
    %v182 = vld [vmem:[%s0 + $0x530] sm:$0xff]
    %v183 = vld [vmem:[%s0 + $0x538] sm:$0xff]
    %v184 = vld [vmem:[%s0 + $0x540] sm:$0xff]
    %v185 = vld [vmem:[%s0 + $0x548] sm:$0xff]
    %v186 = vld [vmem:[%s0 + $0x550] sm:$0xff]
    %v187 = vld [vmem:[%s0 + $0x558] sm:$0xff]
    %v188 = vld [vmem:[%s0 + $0x560] sm:$0xff]
    %v189 = vld [vmem:[%s0 + $0x568] sm:$0xff]
    %v190 = vld [vmem:[%s0 + $0x570] sm:$0xff]
    %v191 = vld [vmem:[%s0 + $0x578] sm:$0xff]
    %v192 = vld [vmem:[%s0 + $0x580] sm:$0xff]
    %v193 = vld [vmem:[%s0 + $0x588] sm:$0xff]
    %v194 = vld [vmem:[%s0 + $0x590] sm:$0xff]
    %v195 = vld [vmem:[%s0 + $0x598] sm:$0xff]
    %v196 = vld [vmem:[%s0 + $0x5a0] sm:$0xff]
    %v197 = vld [vmem:[%s0 + $0x5a8] sm:$0xff]
    %v198 = vld [vmem:[%s0 + $0x5b0] sm:$0xff]
    %v199 = vld [vmem:[%s0 + $0x5b8] sm:$0xff]
    %v200 = vld [vmem:[%s0 + $0x5c0] sm:$0xff]
    %v201 = vld [vmem:[%s0 + $0x5c8] sm:$0xff]
    %v202 = vld [vmem:[%s0 + $0x5d0] sm:$0xff]
    %v203 = vld [vmem:[%s0 + $0x5d8] sm:$0xff]
    %v204 = vld [vmem:[%s0 + $0x5e0] sm:$0xff]
    %v205 = vld [vmem:[%s0 + $0x5e8] sm:$0xff]
    %v206 = vld [vmem:[%s0 + $0x5f0] sm:$0xff]
    %v207 = vld [vmem:[%s0 + $0x5f8] sm:$0xff]
    %v208 = vld [vmem:[%s0 + $0x600] sm:$0xff]
    %v209 = vld [vmem:[%s0 + $0x608] sm:$0xff]
    %v210 = vld [vmem:[%s0 + $0x610] sm:$0xff]
    %v211 = vld [vmem:[%s0 + $0x618] sm:$0xff]
    %v212 = vld [vmem:[%s0 + $0x620] sm:$0xff]
    %v213 = vld [vmem:[%s0 + $0x628] sm:$0xff]
    %v214 = vld [vmem:[%s0 + $0x630] sm:$0xff]
    %v215 = vld [vmem:[%s0 + $0x638] sm:$0xff]
    %v216 = vld [vmem:[%s0 + $0x640] sm:$0xff]
    %v217 = vld [vmem:[%s0 + $0x648] sm:$0xff]
    %v218 = vld [vmem:[%s0 + $0x650] sm:$0xff]
    %v219 = vld [vmem:[%s0 + $0x658] sm:$0xff]
    %v220 = vld [vmem:[%s0 + $0x660] sm:$0xff]
    %v221 = vld [vmem:[%s0 + $0x668] sm:$0xff]
    %v222 = vld [vmem:[%s0 + $0x670] sm:$0xff]
    %v223 = vld [vmem:[%s0 + $0x678] sm:$0xff]
    %v224 = vld [vmem:[%s0 + $0x680] sm:$0xff]
    %v225 = vld [vmem:[%s0 + $0x688] sm:$0xff]
    %v226 = vld [vmem:[%s0 + $0x690] sm:$0xff]
    %v227 = vld [vmem:[%s0 + $0x698] sm:$0xff]
    %v228 = vld [vmem:[%s0 + $0x6a0] sm:$0xff]
    %v229 = vld [vmem:[%s0 + $0x6a8] sm:$0xff]
    %v230 = vld [vmem:[%s0 + $0x6b0] sm:$0xff]
    %v231 = vld [vmem:[%s0 + $0x6b8] sm:$0xff]
    %v232 = vld [vmem:[%s0 + $0x6c0] sm:$0xff]
    %v233 = vld [vmem:[%s0 + $0x6c8] sm:$0xff]
    %v234 = vld [vmem:[%s0 + $0x6d0] sm:$0xff]
    %v235 = vld [vmem:[%s0 + $0x6d8] sm:$0xff]
    %v236 = vld [vmem:[%s0 + $0x6e0] sm:$0xff]
    %v237 = vld [vmem:[%s0 + $0x6e8] sm:$0xff]
    %v238 = vld [vmem:[%s0 + $0x6f0] sm:$0xff]
    %v239 = vld [vmem:[%s0 + $0x6f8] sm:$0xff]
    %v240 = vld [vmem:[%s0 + $0x700] sm:$0xff]
    %v241 = vld [vmem:[%s0 + $0x708] sm:$0xff]
    %v242 = vld [vmem:[%s0 + $0x710] sm:$0xff]
    %v243 = vld [vmem:[%s0 + $0x718] sm:$0xff]
    %v244 = vld [vmem:[%s0 + $0x720] sm:$0xff]
    %v245 = vld [vmem:[%s0 + $0x728] sm:$0xff]
    %v246 = vld [vmem:[%s0 + $0x730] sm:$0xff]
    %v247 = vld [vmem:[%s0 + $0x738] sm:$0xff]
    %v248 = vld [vmem:[%s0 + $0x740] sm:$0xff]
    %v249 = vld [vmem:[%s0 + $0x748] sm:$0xff]
    %v250 = vld [vmem:[%s0 + $0x750] sm:$0xff]
    %v251 = vld [vmem:[%s0 + $0x758] sm:$0xff]
    %v252 = vld [vmem:[%s0 + $0x760] sm:$0xff]
    %v253 = vld [vmem:[%s0 + $0x768] sm:$0xff]
    %v254 = vld [vmem:[%s0 + $0x770] sm:$0xff]
    %v255 = vld [vmem:[%s0 + $0x778] sm:$0xff]
    %v256 = vld [vmem:[%s0 + $0x780] sm:$0xff]
    %v257 = vld [vmem:[%s0 + $0x788] sm:$0xff]
    %v258 = vld [vmem:[%s0 + $0x790] sm:$0xff]
    %v259 = vld [vmem:[%s0 + $0x798] sm:$0xff]
    %v260 = vld [vmem:[%s0 + $0x7a0] sm:$0xff]
    %v261 = vld [vmem:[%s0 + $0x7a8] sm:$0xff]
    %v262 = vld [vmem:[%s0 + $0x7b0] sm:$0xff]
    %v263 = vld [vmem:[%s0 + $0x7b8] sm:$0xff]
    %v264 = vld [vmem:[%s0 + $0x7c0] sm:$0xff]
    %v265 = vld [vmem:[%s0 + $0x7c8] sm:$0xff]
    %v266 = vld [vmem:[%s1] sm:$0xff]
    %v267 = vld [vmem:[%s1 + $0x8] sm:$0x3]
    %v270 = vperm.slane %v266, 0
    %v271 = vperm.slane %v266, 1
    %v272 = vperm.slane %v266, 2
    %v273 = vperm.slane %v266, 3
    %v274 = vperm.slane %v266, 4
    %v275 = vperm.slane %v266, 5
    %v276 = vperm.slane %v266, 6
    %v277 = vperm.slane %v266, 7
    %v278 = vperm.slane %v267, 0
    %v279 = vperm.slane %v267, 1
    %v290 = vmul.f32 %v16, %v270
    %v291 = vmul.f32 %v17, %v271
    %v292 = vmul.f32 %v18, %v272
    %v293 = vmul.f32 %v19, %v273
    %v294 = vmul.f32 %v20, %v274
    %v295 = vmul.f32 %v21, %v275
    %v296 = vmul.f32 %v22, %v276
    %v297 = vmul.f32 %v23, %v277
    %v298 = vmul.f32 %v24, %v278
    %v299 = vmul.f32 %v25, %v279
    %v300 = vmul.f32 %v26, %v270
    %v301 = vmul.f32 %v27, %v271
    %v302 = vmul.f32 %v28, %v272
    %v303 = vmul.f32 %v29, %v273
    %v304 = vmul.f32 %v30, %v274
    %v305 = vmul.f32 %v31, %v275
    %v306 = vmul.f32 %v32, %v276
    %v307 = vmul.f32 %v33, %v277
    %v308 = vmul.f32 %v34, %v278
    %v309 = vmul.f32 %v35, %v279
    %v310 = vmul.f32 %v36, %v270
    %v311 = vmul.f32 %v37, %v271
    %v312 = vmul.f32 %v38, %v272
    %v313 = vmul.f32 %v39, %v273
    %v314 = vmul.f32 %v40, %v274
    %v315 = vmul.f32 %v41, %v275
    %v316 = vmul.f32 %v42, %v276
    %v317 = vmul.f32 %v43, %v277
    %v318 = vmul.f32 %v44, %v278
    %v319 = vmul.f32 %v45, %v279
    %v320 = vmul.f32 %v46, %v270
    %v321 = vmul.f32 %v47, %v271
    %v322 = vmul.f32 %v48, %v272
    %v323 = vmul.f32 %v49, %v273
    %v324 = vmul.f32 %v50, %v274
    %v325 = vmul.f32 %v51, %v275
    %v326 = vmul.f32 %v52, %v276
    %v327 = vmul.f32 %v53, %v277
    %v328 = vmul.f32 %v54, %v278
    %v329 = vmul.f32 %v55, %v279
    %v330 = vmul.f32 %v56, %v270
    %v331 = vmul.f32 %v57, %v271
    %v332 = vmul.f32 %v58, %v272
    %v333 = vmul.f32 %v59, %v273
    %v334 = vmul.f32 %v60, %v274
    %v335 = vmul.f32 %v61, %v275
    %v336 = vmul.f32 %v62, %v276
    %v337 = vmul.f32 %v63, %v277
    %v338 = vmul.f32 %v64, %v278
    %v339 = vmul.f32 %v65, %v279
    %v340 = vmul.f32 %v66, %v270
    %v341 = vmul.f32 %v67, %v271
    %v342 = vmul.f32 %v68, %v272
    %v343 = vmul.f32 %v69, %v273
    %v344 = vmul.f32 %v70, %v274
    %v345 = vmul.f32 %v71, %v275
    %v346 = vmul.f32 %v72, %v276
    %v347 = vmul.f32 %v73, %v277
    %v348 = vmul.f32 %v74, %v278
    %v349 = vmul.f32 %v75, %v279
    %v350 = vmul.f32 %v76, %v270
    %v351 = vmul.f32 %v77, %v271
    %v352 = vmul.f32 %v78, %v272
    %v353 = vmul.f32 %v79, %v273
    %v354 = vmul.f32 %v80, %v274
    %v355 = vmul.f32 %v81, %v275
    %v356 = vmul.f32 %v82, %v276
    %v357 = vmul.f32 %v83, %v277
    %v358 = vmul.f32 %v84, %v278
    %v359 = vmul.f32 %v85, %v279
    %v360 = vmul.f32 %v86, %v270
    %v361 = vmul.f32 %v87, %v271
    %v362 = vmul.f32 %v88, %v272
    %v363 = vmul.f32 %v89, %v273
    %v364 = vmul.f32 %v90, %v274
    %v365 = vmul.f32 %v91, %v275
    %v366 = vmul.f32 %v92, %v276
    %v367 = vmul.f32 %v93, %v277
    %v368 = vmul.f32 %v94, %v278
    %v369 = vmul.f32 %v95, %v279
    %v370 = vmul.f32 %v96, %v270
    %v371 = vmul.f32 %v97, %v271
    %v372 = vmul.f32 %v98, %v272
    %v373 = vmul.f32 %v99, %v273
    %v374 = vmul.f32 %v100, %v274
    %v375 = vmul.f32 %v101, %v275
    %v376 = vmul.f32 %v102, %v276
    %v377 = vmul.f32 %v103, %v277
    %v378 = vmul.f32 %v104, %v278
    %v379 = vmul.f32 %v105, %v279
    %v380 = vmul.f32 %v106, %v270
    %v381 = vmul.f32 %v107, %v271
    %v382 = vmul.f32 %v108, %v272
    %v383 = vmul.f32 %v109, %v273
    %v384 = vmul.f32 %v110, %v274
    %v385 = vmul.f32 %v111, %v275
    %v386 = vmul.f32 %v112, %v276
    %v387 = vmul.f32 %v113, %v277
    %v388 = vmul.f32 %v114, %v278
    %v389 = vmul.f32 %v115, %v279
    %v390 = vmul.f32 %v116, %v270
    %v391 = vmul.f32 %v117, %v271
    %v392 = vmul.f32 %v118, %v272
    %v393 = vmul.f32 %v119, %v273
    %v394 = vmul.f32 %v120, %v274
    %v395 = vmul.f32 %v121, %v275
    %v396 = vmul.f32 %v122, %v276
    %v397 = vmul.f32 %v123, %v277
    %v398 = vmul.f32 %v124, %v278
    %v399 = vmul.f32 %v125, %v279
    %v400 = vmul.f32 %v126, %v270
    %v401 = vmul.f32 %v127, %v271
    %v402 = vmul.f32 %v128, %v272
    %v403 = vmul.f32 %v129, %v273
    %v404 = vmul.f32 %v130, %v274
    %v405 = vmul.f32 %v131, %v275
    %v406 = vmul.f32 %v132, %v276
    %v407 = vmul.f32 %v133, %v277
    %v408 = vmul.f32 %v134, %v278
    %v409 = vmul.f32 %v135, %v279
    %v410 = vmul.f32 %v136, %v270
    %v411 = vmul.f32 %v137, %v271
    %v412 = vmul.f32 %v138, %v272
    %v413 = vmul.f32 %v139, %v273
    %v414 = vmul.f32 %v140, %v274
    %v415 = vmul.f32 %v141, %v275
    %v416 = vmul.f32 %v142, %v276
    %v417 = vmul.f32 %v143, %v277
    %v418 = vmul.f32 %v144, %v278
    %v419 = vmul.f32 %v145, %v279
    %v420 = vmul.f32 %v146, %v270
    %v421 = vmul.f32 %v147, %v271
    %v422 = vmul.f32 %v148, %v272
    %v423 = vmul.f32 %v149, %v273
    %v424 = vmul.f32 %v150, %v274
    %v425 = vmul.f32 %v151, %v275
    %v426 = vmul.f32 %v152, %v276
    %v427 = vmul.f32 %v153, %v277
    %v428 = vmul.f32 %v154, %v278
    %v429 = vmul.f32 %v155, %v279
    %v430 = vmul.f32 %v156, %v270
    %v431 = vmul.f32 %v157, %v271
    %v432 = vmul.f32 %v158, %v272
    %v433 = vmul.f32 %v159, %v273
    %v434 = vmul.f32 %v160, %v274
    %v435 = vmul.f32 %v161, %v275
    %v436 = vmul.f32 %v162, %v276
    %v437 = vmul.f32 %v163, %v277
    %v438 = vmul.f32 %v164, %v278
    %v439 = vmul.f32 %v165, %v279
    %v440 = vmul.f32 %v166, %v270
    %v441 = vmul.f32 %v167, %v271
    %v442 = vmul.f32 %v168, %v272
    %v443 = vmul.f32 %v169, %v273
    %v444 = vmul.f32 %v170, %v274
    %v445 = vmul.f32 %v171, %v275
    %v446 = vmul.f32 %v172, %v276
    %v447 = vmul.f32 %v173, %v277
    %v448 = vmul.f32 %v174, %v278
    %v449 = vmul.f32 %v175, %v279
    %v450 = vmul.f32 %v176, %v270
    %v451 = vmul.f32 %v177, %v271
    %v452 = vmul.f32 %v178, %v272
    %v453 = vmul.f32 %v179, %v273
    %v454 = vmul.f32 %v180, %v274
    %v455 = vmul.f32 %v181, %v275
    %v456 = vmul.f32 %v182, %v276
    %v457 = vmul.f32 %v183, %v277
    %v458 = vmul.f32 %v184, %v278
    %v459 = vmul.f32 %v185, %v279
    %v460 = vmul.f32 %v186, %v270
    %v461 = vmul.f32 %v187, %v271
    %v462 = vmul.f32 %v188, %v272
    %v463 = vmul.f32 %v189, %v273
    %v464 = vmul.f32 %v190, %v274
    %v465 = vmul.f32 %v191, %v275
    %v466 = vmul.f32 %v192, %v276
    %v467 = vmul.f32 %v193, %v277
    %v468 = vmul.f32 %v194, %v278
    %v469 = vmul.f32 %v195, %v279
    %v470 = vmul.f32 %v196, %v270
    %v471 = vmul.f32 %v197, %v271
    %v472 = vmul.f32 %v198, %v272
    %v473 = vmul.f32 %v199, %v273
    %v474 = vmul.f32 %v200, %v274
    %v475 = vmul.f32 %v201, %v275
    %v476 = vmul.f32 %v202, %v276
    %v477 = vmul.f32 %v203, %v277
    %v478 = vmul.f32 %v204, %v278
    %v479 = vmul.f32 %v205, %v279
    %v480 = vmul.f32 %v206, %v270
    %v481 = vmul.f32 %v207, %v271
    %v482 = vmul.f32 %v208, %v272
    %v483 = vmul.f32 %v209, %v273
    %v484 = vmul.f32 %v210, %v274
    %v485 = vmul.f32 %v211, %v275
    %v486 = vmul.f32 %v212, %v276
    %v487 = vmul.f32 %v213, %v277
    %v488 = vmul.f32 %v214, %v278
    %v489 = vmul.f32 %v215, %v279
    %v490 = vmul.f32 %v216, %v270
    %v491 = vmul.f32 %v217, %v271
    %v492 = vmul.f32 %v218, %v272
    %v493 = vmul.f32 %v219, %v273
    %v494 = vmul.f32 %v220, %v274
    %v495 = vmul.f32 %v221, %v275
    %v496 = vmul.f32 %v222, %v276
    %v497 = vmul.f32 %v223, %v277
    %v498 = vmul.f32 %v224, %v278
    %v499 = vmul.f32 %v225, %v279
    %v500 = vmul.f32 %v226, %v270
    %v501 = vmul.f32 %v227, %v271
    %v502 = vmul.f32 %v228, %v272
    %v503 = vmul.f32 %v229, %v273
    %v504 = vmul.f32 %v230, %v274
    %v505 = vmul.f32 %v231, %v275
    %v506 = vmul.f32 %v232, %v276
    %v507 = vmul.f32 %v233, %v277
    %v508 = vmul.f32 %v234, %v278
    %v509 = vmul.f32 %v235, %v279
    %v510 = vmul.f32 %v236, %v270
    %v511 = vmul.f32 %v237, %v271
    %v512 = vmul.f32 %v238, %v272
    %v513 = vmul.f32 %v239, %v273
    %v514 = vmul.f32 %v240, %v274
    %v515 = vmul.f32 %v241, %v275
    %v516 = vmul.f32 %v242, %v276
    %v517 = vmul.f32 %v243, %v277
    %v518 = vmul.f32 %v244, %v278
    %v519 = vmul.f32 %v245, %v279
    %v520 = vmul.f32 %v246, %v270
    %v521 = vmul.f32 %v247, %v271
    %v522 = vmul.f32 %v248, %v272
    %v523 = vmul.f32 %v249, %v273
    %v524 = vmul.f32 %v250, %v274
    %v525 = vmul.f32 %v251, %v275
    %v526 = vmul.f32 %v252, %v276
    %v527 = vmul.f32 %v253, %v277
    %v528 = vmul.f32 %v254, %v278
    %v529 = vmul.f32 %v255, %v279
    %v530 = vmul.f32 %v256, %v270
    %v531 = vmul.f32 %v257, %v271
    %v532 = vmul.f32 %v258, %v272
    %v533 = vmul.f32 %v259, %v273
    %v534 = vmul.f32 %v260, %v274
    %v535 = vmul.f32 %v261, %v275
    %v536 = vmul.f32 %v262, %v276
    %v537 = vmul.f32 %v263, %v277
    %v538 = vmul.f32 %v264, %v278
    %v539 = vmul.f32 %v265, %v279
    %v540 = vpack.c.bf16 %v300, %v290
    %v541 = vpack.c.bf16 %v301, %v291
    %v542 = vpack.c.bf16 %v302, %v292
    %v543 = vpack.c.bf16 %v303, %v293
    %v544 = vpack.c.bf16 %v304, %v294
    %v545 = vpack.c.bf16 %v305, %v295
    %v546 = vpack.c.bf16 %v306, %v296
    %v547 = vpack.c.bf16 %v307, %v297
    %v548 = vpack.c.bf16 %v308, %v298
    %v549 = vpack.c.bf16 %v309, %v299
    %v550 = vpack.c.bf16 %v320, %v310
    %v551 = vpack.c.bf16 %v321, %v311
    %v552 = vpack.c.bf16 %v322, %v312
    %v553 = vpack.c.bf16 %v323, %v313
    %v554 = vpack.c.bf16 %v324, %v314
    %v555 = vpack.c.bf16 %v325, %v315
    %v556 = vpack.c.bf16 %v326, %v316
    %v557 = vpack.c.bf16 %v327, %v317
    %v558 = vpack.c.bf16 %v328, %v318
    %v559 = vpack.c.bf16 %v329, %v319
    %v560 = vpack.c.bf16 %v340, %v330
    %v561 = vpack.c.bf16 %v341, %v331
    %v562 = vpack.c.bf16 %v342, %v332
    %v563 = vpack.c.bf16 %v343, %v333
    %v564 = vpack.c.bf16 %v344, %v334
    %v565 = vpack.c.bf16 %v345, %v335
    %v566 = vpack.c.bf16 %v346, %v336
    %v567 = vpack.c.bf16 %v347, %v337
    %v568 = vpack.c.bf16 %v348, %v338
    %v569 = vpack.c.bf16 %v349, %v339
    %v570 = vpack.c.bf16 %v360, %v350
    %v571 = vpack.c.bf16 %v361, %v351
    %v572 = vpack.c.bf16 %v362, %v352
    %v573 = vpack.c.bf16 %v363, %v353
    %v574 = vpack.c.bf16 %v364, %v354
    %v575 = vpack.c.bf16 %v365, %v355
    %v576 = vpack.c.bf16 %v366, %v356
    %v577 = vpack.c.bf16 %v367, %v357
    %v578 = vpack.c.bf16 %v368, %v358
    %v579 = vpack.c.bf16 %v369, %v359
    %v580 = vpack.c.bf16 %v380, %v370
    %v581 = vpack.c.bf16 %v381, %v371
    %v582 = vpack.c.bf16 %v382, %v372
    %v583 = vpack.c.bf16 %v383, %v373
    %v584 = vpack.c.bf16 %v384, %v374
    %v585 = vpack.c.bf16 %v385, %v375
    %v586 = vpack.c.bf16 %v386, %v376
    %v587 = vpack.c.bf16 %v387, %v377
    %v588 = vpack.c.bf16 %v388, %v378
    %v589 = vpack.c.bf16 %v389, %v379
    %v590 = vpack.c.bf16 %v400, %v390
    %v591 = vpack.c.bf16 %v401, %v391
    %v592 = vpack.c.bf16 %v402, %v392
    %v593 = vpack.c.bf16 %v403, %v393
    %v594 = vpack.c.bf16 %v404, %v394
    %v595 = vpack.c.bf16 %v405, %v395
    %v596 = vpack.c.bf16 %v406, %v396
    %v597 = vpack.c.bf16 %v407, %v397
    %v598 = vpack.c.bf16 %v408, %v398
    %v599 = vpack.c.bf16 %v409, %v399
    %v600 = vpack.c.bf16 %v420, %v410
    %v601 = vpack.c.bf16 %v421, %v411
    %v602 = vpack.c.bf16 %v422, %v412
    %v603 = vpack.c.bf16 %v423, %v413
    %v604 = vpack.c.bf16 %v424, %v414
    %v605 = vpack.c.bf16 %v425, %v415
    %v606 = vpack.c.bf16 %v426, %v416
    %v607 = vpack.c.bf16 %v427, %v417
    %v608 = vpack.c.bf16 %v428, %v418
    %v609 = vpack.c.bf16 %v429, %v419
    %v610 = vpack.c.bf16 %v440, %v430
    %v611 = vpack.c.bf16 %v441, %v431
    %v612 = vpack.c.bf16 %v442, %v432
    %v613 = vpack.c.bf16 %v443, %v433
    %v614 = vpack.c.bf16 %v444, %v434
    %v615 = vpack.c.bf16 %v445, %v435
    %v616 = vpack.c.bf16 %v446, %v436
    %v617 = vpack.c.bf16 %v447, %v437
    %v618 = vpack.c.bf16 %v448, %v438
    %v619 = vpack.c.bf16 %v449, %v439
    %v620 = vpack.c.bf16 %v460, %v450
    %v621 = vpack.c.bf16 %v461, %v451
    %v622 = vpack.c.bf16 %v462, %v452
    %v623 = vpack.c.bf16 %v463, %v453
    %v624 = vpack.c.bf16 %v464, %v454
    %v625 = vpack.c.bf16 %v465, %v455
    %v626 = vpack.c.bf16 %v466, %v456
    %v627 = vpack.c.bf16 %v467, %v457
    %v628 = vpack.c.bf16 %v468, %v458
    %v629 = vpack.c.bf16 %v469, %v459
    %v630 = vpack.c.bf16 %v480, %v470
    %v631 = vpack.c.bf16 %v481, %v471
    %v632 = vpack.c.bf16 %v482, %v472
    %v633 = vpack.c.bf16 %v483, %v473
    %v634 = vpack.c.bf16 %v484, %v474
    %v635 = vpack.c.bf16 %v485, %v475
    %v636 = vpack.c.bf16 %v486, %v476
    %v637 = vpack.c.bf16 %v487, %v477
    %v638 = vpack.c.bf16 %v488, %v478
    %v639 = vpack.c.bf16 %v489, %v479
    %v640 = vpack.c.bf16 %v500, %v490
    %v641 = vpack.c.bf16 %v501, %v491
    %v642 = vpack.c.bf16 %v502, %v492
    %v643 = vpack.c.bf16 %v503, %v493
    %v644 = vpack.c.bf16 %v504, %v494
    %v645 = vpack.c.bf16 %v505, %v495
    %v646 = vpack.c.bf16 %v506, %v496
    %v647 = vpack.c.bf16 %v507, %v497
    %v648 = vpack.c.bf16 %v508, %v498
    %v649 = vpack.c.bf16 %v509, %v499
    %v650 = vpack.c.bf16 %v520, %v510
    %v651 = vpack.c.bf16 %v521, %v511
    %v652 = vpack.c.bf16 %v522, %v512
    %v653 = vpack.c.bf16 %v523, %v513
    %v654 = vpack.c.bf16 %v524, %v514
    %v655 = vpack.c.bf16 %v525, %v515
    %v656 = vpack.c.bf16 %v526, %v516
    %v657 = vpack.c.bf16 %v527, %v517
    %v658 = vpack.c.bf16 %v528, %v518
    %v659 = vpack.c.bf16 %v529, %v519
    %v660 = vpack.c.bf16 %v530, %v530
    %v661 = vpack.c.bf16 %v531, %v531
    %v662 = vpack.c.bf16 %v532, %v532
    %v663 = vpack.c.bf16 %v533, %v533
    %v664 = vpack.c.bf16 %v534, %v534
    %v665 = vpack.c.bf16 %v535, %v535
    %v666 = vpack.c.bf16 %v536, %v536
    %v667 = vpack.c.bf16 %v537, %v537
    %v668 = vpack.c.bf16 %v538, %v538
    %v669 = vpack.c.bf16 %v539, %v539
    %v670 = vld [vmem:[%s2] sm:$0xff]
    %v671 = vld [vmem:[%s2 + $0x8] sm:$0xff]
    %v672 = vld [vmem:[%s2 + $0x10] sm:$0xff]
    %v673 = vld [vmem:[%s2 + $0x18] sm:$0xff]
    %v674 = vld [vmem:[%s2 + $0x20] sm:$0xff]
    %v675 = vld [vmem:[%s2 + $0x28] sm:$0xff]
    %v676 = vld [vmem:[%s2 + $0x30] sm:$0xff]
    %v677 = vld [vmem:[%s2 + $0x38] sm:$0xff]
    %v678 = vld [vmem:[%s2 + $0x40] sm:$0xff]
    %v679 = vld [vmem:[%s2 + $0x48] sm:$0xff]
    %v680 = vld [vmem:[%s2 + $0x50] sm:$0xff]
    %v681 = vld [vmem:[%s2 + $0x58] sm:$0xff]
    %v682 = vld [vmem:[%s2 + $0x60] sm:$0xff]
    %v683 = vld [vmem:[%s2 + $0x68] sm:$0xff]
    %v684 = vld [vmem:[%s2 + $0x70] sm:$0xff]
    %v685 = vld [vmem:[%s2 + $0x78] sm:$0xff]
    %v686 = vld [vmem:[%s2 + $0x80] sm:$0xff]
    %v687 = vld [vmem:[%s2 + $0x88] sm:$0xff]
    %v688 = vld [vmem:[%s2 + $0x90] sm:$0xff]
    %v689 = vld [vmem:[%s2 + $0x98] sm:$0xff]
    %v690 = vld [vmem:[%s2 + $0xa0] sm:$0xff]
    %v691 = vld [vmem:[%s2 + $0xa8] sm:$0xff]
    %v692 = vld [vmem:[%s2 + $0xb0] sm:$0xff]
    %v693 = vld [vmem:[%s2 + $0xb8] sm:$0xff]
    %v694 = vld [vmem:[%s2 + $0xc0] sm:$0xff]
    %v695 = vld [vmem:[%s2 + $0xc8] sm:$0xff]
    %v696 = vld [vmem:[%s2 + $0xd0] sm:$0xff]
    %v697 = vld [vmem:[%s2 + $0xd8] sm:$0xff]
    %v698 = vld [vmem:[%s2 + $0xe0] sm:$0xff]
    %v699 = vld [vmem:[%s2 + $0xe8] sm:$0xff]
    %v700 = vld [vmem:[%s2 + $0xf0] sm:$0xff]
    %v701 = vld [vmem:[%s2 + $0xf8] sm:$0xff]
    %v702 = vld [vmem:[%s2 + $0x100] sm:$0xff]
    %v703 = vld [vmem:[%s2 + $0x108] sm:$0xff]
    %v704 = vld [vmem:[%s2 + $0x110] sm:$0xff]
    %v705 = vld [vmem:[%s2 + $0x118] sm:$0xff]
    %v706 = vld [vmem:[%s2 + $0x120] sm:$0xff]
    %v707 = vld [vmem:[%s2 + $0x128] sm:$0xff]
    %v708 = vld [vmem:[%s2 + $0x130] sm:$0xff]
    %v709 = vld [vmem:[%s2 + $0x138] sm:$0xff]
    %v710 = vld [vmem:[%s2 + $0x140] sm:$0xff]
    %v711 = vld [vmem:[%s2 + $0x148] sm:$0xff]
    %v712 = vld [vmem:[%s2 + $0x150] sm:$0xff]
    %v713 = vld [vmem:[%s2 + $0x158] sm:$0xff]
    %v714 = vld [vmem:[%s2 + $0x160] sm:$0xff]
    %v715 = vld [vmem:[%s2 + $0x168] sm:$0xff]
    %v716 = vld [vmem:[%s2 + $0x170] sm:$0xff]
    %v717 = vld [vmem:[%s2 + $0x178] sm:$0xff]
    %v718 = vld [vmem:[%s2 + $0x180] sm:$0xff]
    %v719 = vld [vmem:[%s2 + $0x188] sm:$0xff]
    %v720 = vld [vmem:[%s2 + $0x190] sm:$0xff]
    %v721 = vld [vmem:[%s2 + $0x198] sm:$0xff]
    %v722 = vld [vmem:[%s2 + $0x1a0] sm:$0xff]
    %v723 = vld [vmem:[%s2 + $0x1a8] sm:$0xff]
    %v724 = vld [vmem:[%s2 + $0x1b0] sm:$0xff]
    %v725 = vld [vmem:[%s2 + $0x1b8] sm:$0xff]
    %v726 = vld [vmem:[%s2 + $0x1c0] sm:$0xff]
    %v727 = vld [vmem:[%s2 + $0x1c8] sm:$0xff]
    %v728 = vld [vmem:[%s2 + $0x1d0] sm:$0xff]
    %v729 = vld [vmem:[%s2 + $0x1d8] sm:$0xff]
    %v730 = vld [vmem:[%s2 + $0x1e0] sm:$0xff]
    %v731 = vld [vmem:[%s2 + $0x1e8] sm:$0xff]
    %v732 = vld [vmem:[%s2 + $0x1f0] sm:$0xff]
    %v733 = vld [vmem:[%s2 + $0x1f8] sm:$0xff]
    %v734 = vld [vmem:[%s2 + $0x200] sm:$0xff]
    %v735 = vld [vmem:[%s2 + $0x208] sm:$0xff]
    %v736 = vld [vmem:[%s2 + $0x210] sm:$0xff]
    %v737 = vld [vmem:[%s2 + $0x218] sm:$0xff]
    %v738 = vld [vmem:[%s2 + $0x220] sm:$0xff]
    %v739 = vld [vmem:[%s2 + $0x228] sm:$0xff]
    %v740 = vld [vmem:[%s2 + $0x230] sm:$0xff]
    %v741 = vld [vmem:[%s2 + $0x238] sm:$0xff]
    %v742 = vld [vmem:[%s2 + $0x240] sm:$0xff]
    %v743 = vld [vmem:[%s2 + $0x248] sm:$0xff]
    %v744 = vld [vmem:[%s2 + $0x250] sm:$0xff]
    %v745 = vld [vmem:[%s2 + $0x258] sm:$0xff]
    %v746 = vld [vmem:[%s2 + $0x260] sm:$0xff]
    %v747 = vld [vmem:[%s2 + $0x268] sm:$0xff]
    %v748 = vld [vmem:[%s2 + $0x270] sm:$0xff]
    %v749 = vld [vmem:[%s2 + $0x278] sm:$0xff]
    %v750 = vld [vmem:[%s2 + $0x280] sm:$0xff]
    %v751 = vld [vmem:[%s2 + $0x288] sm:$0xff]
    %v752 = vld [vmem:[%s2 + $0x290] sm:$0xff]
    %v753 = vld [vmem:[%s2 + $0x298] sm:$0xff]
    %v754 = vld [vmem:[%s2 + $0x2a0] sm:$0xff]
    %v755 = vld [vmem:[%s2 + $0x2a8] sm:$0xff]
    %v756 = vld [vmem:[%s2 + $0x2b0] sm:$0xff]
    %v757 = vld [vmem:[%s2 + $0x2b8] sm:$0xff]
    %v758 = vld [vmem:[%s2 + $0x2c0] sm:$0xff]
    %v759 = vld [vmem:[%s2 + $0x2c8] sm:$0xff]
    %v760 = vld [vmem:[%s2 + $0x2d0] sm:$0xff]
    %v761 = vld [vmem:[%s2 + $0x2d8] sm:$0xff]
    %v762 = vld [vmem:[%s2 + $0x2e0] sm:$0xff]
    %v763 = vld [vmem:[%s2 + $0x2e8] sm:$0xff]
    %v764 = vld [vmem:[%s2 + $0x2f0] sm:$0xff]
    %v765 = vld [vmem:[%s2 + $0x2f8] sm:$0xff]
    %v766 = vld [vmem:[%s2 + $0x300] sm:$0xff]
    %v767 = vld [vmem:[%s2 + $0x308] sm:$0xff]
    %v768 = vld [vmem:[%s2 + $0x310] sm:$0xff]
    %v769 = vld [vmem:[%s2 + $0x318] sm:$0xff]
    %v770 = vld [vmem:[%s2 + $0x320] sm:$0xff]
    %v771 = vld [vmem:[%s2 + $0x328] sm:$0xff]
    %v772 = vld [vmem:[%s2 + $0x330] sm:$0xff]
    %v773 = vld [vmem:[%s2 + $0x338] sm:$0xff]
    %v774 = vld [vmem:[%s2 + $0x340] sm:$0xff]
    %v775 = vld [vmem:[%s2 + $0x348] sm:$0xff]
    %v776 = vld [vmem:[%s2 + $0x350] sm:$0xff]
    %v777 = vld [vmem:[%s2 + $0x358] sm:$0xff]
    %v778 = vld [vmem:[%s2 + $0x360] sm:$0xff]
    %v779 = vld [vmem:[%s2 + $0x368] sm:$0xff]
    %v780 = vld [vmem:[%s2 + $0x370] sm:$0xff]
    %v781 = vld [vmem:[%s2 + $0x378] sm:$0xff]
    %v782 = vld [vmem:[%s2 + $0x380] sm:$0xff]
    %v783 = vld [vmem:[%s2 + $0x388] sm:$0xff]
    %v784 = vld [vmem:[%s2 + $0x390] sm:$0xff]
    %v785 = vld [vmem:[%s2 + $0x398] sm:$0xff]
    %v786 = vld [vmem:[%s2 + $0x3a0] sm:$0xff]
    %v787 = vld [vmem:[%s2 + $0x3a8] sm:$0xff]
    %v788 = vld [vmem:[%s2 + $0x3b0] sm:$0xff]
    %v789 = vld [vmem:[%s2 + $0x3b8] sm:$0xff]
    %v790 = vld [vmem:[%s2 + $0x3c0] sm:$0xff]
    %v791 = vld [vmem:[%s2 + $0x3c8] sm:$0xff]
    %v792 = vld [vmem:[%s2 + $0x3d0] sm:$0xff]
    %v793 = vld [vmem:[%s2 + $0x3d8] sm:$0xff]
    %v794 = vld [vmem:[%s2 + $0x3e0] sm:$0xff]
    %v795 = vld [vmem:[%s2 + $0x3e8] sm:$0xff]
    %v796 = vld [vmem:[%s2 + $0x3f0] sm:$0xff]
    %v797 = vld [vmem:[%s2 + $0x3f8] sm:$0xff]
    %v798 = vld [vmem:[%s2 + $0x400] sm:$0xff]
    %v799 = vld [vmem:[%s2 + $0x408] sm:$0xff]
    %v800 = vld [vmem:[%s2 + $0x410] sm:$0xff]
    %v801 = vld [vmem:[%s2 + $0x418] sm:$0xff]
    %v802 = vld [vmem:[%s2 + $0x420] sm:$0xff]
    %v803 = vld [vmem:[%s2 + $0x428] sm:$0xff]
    %v804 = vld [vmem:[%s2 + $0x430] sm:$0xff]
    %v805 = vld [vmem:[%s2 + $0x438] sm:$0xff]
    %v806 = vld [vmem:[%s2 + $0x440] sm:$0xff]
    %v807 = vld [vmem:[%s2 + $0x448] sm:$0xff]
    %v808 = vld [vmem:[%s2 + $0x450] sm:$0xff]
    %v809 = vld [vmem:[%s2 + $0x458] sm:$0xff]
    %v810 = vld [vmem:[%s2 + $0x460] sm:$0xff]
    %v811 = vld [vmem:[%s2 + $0x468] sm:$0xff]
    %v812 = vld [vmem:[%s2 + $0x470] sm:$0xff]
    %v813 = vld [vmem:[%s2 + $0x478] sm:$0xff]
    %v814 = vld [vmem:[%s2 + $0x480] sm:$0xff]
    %v815 = vld [vmem:[%s2 + $0x488] sm:$0xff]
    %v816 = vld [vmem:[%s2 + $0x490] sm:$0xff]
    %v817 = vld [vmem:[%s2 + $0x498] sm:$0xff]
    %v818 = vld [vmem:[%s2 + $0x4a0] sm:$0xff]
    %v819 = vld [vmem:[%s2 + $0x4a8] sm:$0xff]
    %v820 = vld [vmem:[%s2 + $0x4b0] sm:$0xff]
    %v821 = vld [vmem:[%s2 + $0x4b8] sm:$0xff]
    %v822 = vld [vmem:[%s2 + $0x4c0] sm:$0xff]
    %v823 = vld [vmem:[%s2 + $0x4c8] sm:$0xff]
    %v824 = vld [vmem:[%s2 + $0x4d0] sm:$0xff]
    %v825 = vld [vmem:[%s2 + $0x4d8] sm:$0xff]
    %v826 = vld [vmem:[%s2 + $0x4e0] sm:$0xff]
    %v827 = vld [vmem:[%s2 + $0x4e8] sm:$0xff]
    %v828 = vld [vmem:[%s2 + $0x4f0] sm:$0xff]
    %v829 = vld [vmem:[%s2 + $0x4f8] sm:$0xff]
    %v830 = vld [vmem:[%s2 + $0x500] sm:$0xff]
    %v831 = vld [vmem:[%s2 + $0x508] sm:$0xff]
    %v832 = vld [vmem:[%s2 + $0x510] sm:$0xff]
    %v833 = vld [vmem:[%s2 + $0x518] sm:$0xff]
    %v834 = vld [vmem:[%s2 + $0x520] sm:$0xff]
    %v835 = vld [vmem:[%s2 + $0x528] sm:$0xff]
    %v836 = vld [vmem:[%s2 + $0x530] sm:$0xff]
    %v837 = vld [vmem:[%s2 + $0x538] sm:$0xff]
    %v838 = vld [vmem:[%s2 + $0x540] sm:$0xff]
    %v839 = vld [vmem:[%s2 + $0x548] sm:$0xff]
    %v840 = vld [vmem:[%s2 + $0x550] sm:$0xff]
    %v841 = vld [vmem:[%s2 + $0x558] sm:$0xff]
    %v842 = vld [vmem:[%s2 + $0x560] sm:$0xff]
    %v843 = vld [vmem:[%s2 + $0x568] sm:$0xff]
    %v844 = vld [vmem:[%s2 + $0x570] sm:$0xff]
    %v845 = vld [vmem:[%s2 + $0x578] sm:$0xff]
    %v846 = vld [vmem:[%s2 + $0x580] sm:$0xff]
    %v847 = vld [vmem:[%s2 + $0x588] sm:$0xff]
    %v848 = vld [vmem:[%s2 + $0x590] sm:$0xff]
    %v849 = vld [vmem:[%s2 + $0x598] sm:$0xff]
    %v850 = vld [vmem:[%s2 + $0x5a0] sm:$0xff]
    %v851 = vld [vmem:[%s2 + $0x5a8] sm:$0xff]
    %v852 = vld [vmem:[%s2 + $0x5b0] sm:$0xff]
    %v853 = vld [vmem:[%s2 + $0x5b8] sm:$0xff]
    %v854 = vld [vmem:[%s2 + $0x5c0] sm:$0xff]
    %v855 = vld [vmem:[%s2 + $0x5c8] sm:$0xff]
    %v856 = vld [vmem:[%s2 + $0x5d0] sm:$0xff]
    %v857 = vld [vmem:[%s2 + $0x5d8] sm:$0xff]
    %v858 = vld [vmem:[%s2 + $0x5e0] sm:$0xff]
    %v859 = vld [vmem:[%s2 + $0x5e8] sm:$0xff]
    %v860 = vld [vmem:[%s2 + $0x5f0] sm:$0xff]
    %v861 = vld [vmem:[%s2 + $0x5f8] sm:$0xff]
    %v862 = vld [vmem:[%s2 + $0x600] sm:$0xff]
    %v863 = vld [vmem:[%s2 + $0x608] sm:$0xff]
    %v864 = vld [vmem:[%s2 + $0x610] sm:$0xff]
    %v865 = vld [vmem:[%s2 + $0x618] sm:$0xff]
    %v866 = vld [vmem:[%s2 + $0x620] sm:$0xff]
    %v867 = vld [vmem:[%s2 + $0x628] sm:$0xff]
    %v868 = vld [vmem:[%s2 + $0x630] sm:$0xff]
    %v869 = vld [vmem:[%s2 + $0x638] sm:$0xff]
    %v870 = vld [vmem:[%s2 + $0x640] sm:$0xff]
    %v871 = vld [vmem:[%s2 + $0x648] sm:$0xff]
    %v872 = vld [vmem:[%s2 + $0x650] sm:$0xff]
    %v873 = vld [vmem:[%s2 + $0x658] sm:$0xff]
    %v874 = vld [vmem:[%s2 + $0x660] sm:$0xff]
    %v875 = vld [vmem:[%s2 + $0x668] sm:$0xff]
    %v876 = vld [vmem:[%s2 + $0x670] sm:$0xff]
    %v877 = vld [vmem:[%s2 + $0x678] sm:$0xff]
    %v878 = vld [vmem:[%s2 + $0x680] sm:$0xff]
    %v879 = vld [vmem:[%s2 + $0x688] sm:$0xff]
    %v880 = vld [vmem:[%s2 + $0x690] sm:$0xff]
    %v881 = vld [vmem:[%s2 + $0x698] sm:$0xff]
    %v882 = vld [vmem:[%s2 + $0x6a0] sm:$0xff]
    %v883 = vld [vmem:[%s2 + $0x6a8] sm:$0xff]
    %v884 = vld [vmem:[%s2 + $0x6b0] sm:$0xff]
    %v885 = vld [vmem:[%s2 + $0x6b8] sm:$0xff]
    %v886 = vld [vmem:[%s2 + $0x6c0] sm:$0xff]
    %v887 = vld [vmem:[%s2 + $0x6c8] sm:$0xff]
    %v888 = vld [vmem:[%s2 + $0x6d0] sm:$0xff]
    %v889 = vld [vmem:[%s2 + $0x6d8] sm:$0xff]
    %v890 = vld [vmem:[%s2 + $0x6e0] sm:$0xff]
    %v891 = vld [vmem:[%s2 + $0x6e8] sm:$0xff]
    %v892 = vld [vmem:[%s2 + $0x6f0] sm:$0xff]
    %v893 = vld [vmem:[%s2 + $0x6f8] sm:$0xff]
    %v894 = vld [vmem:[%s2 + $0x700] sm:$0xff]
    %v895 = vld [vmem:[%s2 + $0x708] sm:$0xff]
    %v896 = vld [vmem:[%s2 + $0x710] sm:$0xff]
    %v897 = vld [vmem:[%s2 + $0x718] sm:$0xff]
    %v898 = vld [vmem:[%s2 + $0x720] sm:$0xff]
    %v899 = vld [vmem:[%s2 + $0x728] sm:$0xff]
    %v900 = vld [vmem:[%s2 + $0x730] sm:$0xff]
    %v901 = vld [vmem:[%s2 + $0x738] sm:$0xff]
    %v902 = vld [vmem:[%s2 + $0x740] sm:$0xff]
    %v903 = vld [vmem:[%s2 + $0x748] sm:$0xff]
    %v904 = vld [vmem:[%s2 + $0x750] sm:$0xff]
    %v905 = vld [vmem:[%s2 + $0x758] sm:$0xff]
    %v906 = vld [vmem:[%s2 + $0x760] sm:$0xff]
    %v907 = vld [vmem:[%s2 + $0x768] sm:$0xff]
    %v908 = vld [vmem:[%s2 + $0x770] sm:$0xff]
    %v909 = vld [vmem:[%s2 + $0x778] sm:$0xff]
    %v910 = vld [vmem:[%s2 + $0x780] sm:$0xff]
    %v911 = vld [vmem:[%s2 + $0x788] sm:$0xff]
    %v912 = vld [vmem:[%s2 + $0x790] sm:$0xff]
    %v913 = vld [vmem:[%s2 + $0x798] sm:$0xff]
    %v914 = vld [vmem:[%s2 + $0x7a0] sm:$0xff]
    %v915 = vld [vmem:[%s2 + $0x7a8] sm:$0xff]
    %v916 = vld [vmem:[%s2 + $0x7b0] sm:$0xff]
    %v917 = vld [vmem:[%s2 + $0x7b8] sm:$0xff]
    %v918 = vld [vmem:[%s2 + $0x7c0] sm:$0xff]
    %v919 = vld [vmem:[%s2 + $0x7c8] sm:$0xff]
    %v920 = vld [vmem:[%s2 + $0x7d0] sm:$0xff]
    %v921 = vld [vmem:[%s2 + $0x7d8] sm:$0xff]
    %v922 = vld [vmem:[%s2 + $0x7e0] sm:$0xff]
    %v923 = vld [vmem:[%s2 + $0x7e8] sm:$0xff]
    %v924 = vld [vmem:[%s2 + $0x7f0] sm:$0xff]
    %v925 = vld [vmem:[%s2 + $0x7f8] sm:$0xff]
    %v926 = vld [vmem:[%s2 + $0x800] sm:$0xff]
    %v927 = vld [vmem:[%s2 + $0x808] sm:$0xff]
    %v928 = vld [vmem:[%s2 + $0x810] sm:$0xff]
    %v929 = vld [vmem:[%s2 + $0x818] sm:$0xff]
    %v930 = vld [vmem:[%s2 + $0x820] sm:$0xff]
    %v931 = vld [vmem:[%s2 + $0x828] sm:$0xff]
    %v932 = vld [vmem:[%s2 + $0x830] sm:$0xff]
    %v933 = vld [vmem:[%s2 + $0x838] sm:$0xff]
    %v934 = vld [vmem:[%s2 + $0x840] sm:$0xff]
    %v935 = vld [vmem:[%s2 + $0x848] sm:$0xff]
    %v936 = vld [vmem:[%s2 + $0x850] sm:$0xff]
    %v937 = vld [vmem:[%s2 + $0x858] sm:$0xff]
    %v938 = vld [vmem:[%s2 + $0x860] sm:$0xff]
    %v939 = vld [vmem:[%s2 + $0x868] sm:$0xff]
    %v940 = vld [vmem:[%s2 + $0x870] sm:$0xff]
    %v941 = vld [vmem:[%s2 + $0x878] sm:$0xff]
    %v942 = vld [vmem:[%s2 + $0x880] sm:$0xff]
    %v943 = vld [vmem:[%s2 + $0x888] sm:$0xff]
    %v944 = vld [vmem:[%s2 + $0x890] sm:$0xff]
    %v945 = vld [vmem:[%s2 + $0x898] sm:$0xff]
    %v946 = vld [vmem:[%s2 + $0x8a0] sm:$0xff]
    %v947 = vld [vmem:[%s2 + $0x8a8] sm:$0xff]
    %v948 = vld [vmem:[%s2 + $0x8b0] sm:$0xff]
    %v949 = vld [vmem:[%s2 + $0x8b8] sm:$0xff]
    %v950 = vld [vmem:[%s2 + $0x8c0] sm:$0xff]
    %v951 = vld [vmem:[%s2 + $0x8c8] sm:$0xff]
    %v952 = vld [vmem:[%s2 + $0x8d0] sm:$0xff]
    %v953 = vld [vmem:[%s2 + $0x8d8] sm:$0xff]
    %v954 = vld [vmem:[%s2 + $0x8e0] sm:$0xff]
    %v955 = vld [vmem:[%s2 + $0x8e8] sm:$0xff]
    %v956 = vld [vmem:[%s2 + $0x8f0] sm:$0xff]
    %v957 = vld [vmem:[%s2 + $0x8f8] sm:$0xff]
    %v958 = vld [vmem:[%s2 + $0x900] sm:$0xff]
    %v959 = vld [vmem:[%s2 + $0x908] sm:$0xff]
    %v960 = vld [vmem:[%s2 + $0x910] sm:$0xff]
    %v961 = vld [vmem:[%s2 + $0x918] sm:$0xff]
    %v962 = vld [vmem:[%s2 + $0x920] sm:$0xff]
    %v963 = vld [vmem:[%s2 + $0x928] sm:$0xff]
    %v964 = vld [vmem:[%s2 + $0x930] sm:$0xff]
    %v965 = vld [vmem:[%s2 + $0x938] sm:$0xff]
    %v966 = vld [vmem:[%s2 + $0x940] sm:$0xff]
    %v967 = vld [vmem:[%s2 + $0x948] sm:$0xff]
    %v968 = vld [vmem:[%s2 + $0x950] sm:$0xff]
    %v969 = vld [vmem:[%s2 + $0x958] sm:$0xff]
    %v970 = vpack.c.bf16 %v672, %v670
    %v971 = vpack.c.bf16 %v673, %v671
    %v972 = vpack.c.bf16 %v676, %v674
    %v973 = vpack.c.bf16 %v677, %v675
    %v974 = vpack.c.bf16 %v680, %v678
    %v975 = vpack.c.bf16 %v681, %v679
    %v976 = vpack.c.bf16 %v684, %v682
    %v977 = vpack.c.bf16 %v685, %v683
    %v978 = vpack.c.bf16 %v688, %v686
    %v979 = vpack.c.bf16 %v689, %v687
    %v980 = vpack.c.bf16 %v692, %v690
    %v981 = vpack.c.bf16 %v693, %v691
    %v982 = vpack.c.bf16 %v696, %v694
    %v983 = vpack.c.bf16 %v697, %v695
    %v984 = vpack.c.bf16 %v700, %v698
    %v985 = vpack.c.bf16 %v701, %v699
    %v986 = vpack.c.bf16 %v704, %v702
    %v987 = vpack.c.bf16 %v705, %v703
    %v988 = vpack.c.bf16 %v708, %v706
    %v989 = vpack.c.bf16 %v709, %v707
    %v990 = vpack.c.bf16 %v712, %v710
    %v991 = vpack.c.bf16 %v713, %v711
    %v992 = vpack.c.bf16 %v716, %v714
    %v993 = vpack.c.bf16 %v717, %v715
    %v994 = vpack.c.bf16 %v720, %v718
    %v995 = vpack.c.bf16 %v721, %v719
    %v996 = vpack.c.bf16 %v724, %v722
    %v997 = vpack.c.bf16 %v725, %v723
    %v998 = vpack.c.bf16 %v728, %v726
    %v999 = vpack.c.bf16 %v729, %v727
    %v1000 = vpack.c.bf16 %v732, %v730
    %v1001 = vpack.c.bf16 %v733, %v731
    %v1002 = vpack.c.bf16 %v736, %v734
    %v1003 = vpack.c.bf16 %v737, %v735
    %v1004 = vpack.c.bf16 %v740, %v738
    %v1005 = vpack.c.bf16 %v741, %v739
    %v1006 = vpack.c.bf16 %v744, %v742
    %v1007 = vpack.c.bf16 %v745, %v743
    %v1008 = vpack.c.bf16 %v748, %v746
    %v1009 = vpack.c.bf16 %v749, %v747
    %v1010 = vpack.c.bf16 %v752, %v750
    %v1011 = vpack.c.bf16 %v753, %v751
    %v1012 = vpack.c.bf16 %v756, %v754
    %v1013 = vpack.c.bf16 %v757, %v755
    %v1014 = vpack.c.bf16 %v760, %v758
    %v1015 = vpack.c.bf16 %v761, %v759
    %v1016 = vpack.c.bf16 %v764, %v762
    %v1017 = vpack.c.bf16 %v765, %v763
    %v1018 = vpack.c.bf16 %v768, %v766
    %v1019 = vpack.c.bf16 %v769, %v767
    %v1020 = vpack.c.bf16 %v772, %v770
    %v1021 = vpack.c.bf16 %v773, %v771
    %v1022 = vpack.c.bf16 %v776, %v774
    %v1023 = vpack.c.bf16 %v777, %v775
    %v1024 = vpack.c.bf16 %v780, %v778
    %v1025 = vpack.c.bf16 %v781, %v779
    %v1026 = vpack.c.bf16 %v784, %v782
    %v1027 = vpack.c.bf16 %v785, %v783
    %v1028 = vpack.c.bf16 %v788, %v786
    %v1029 = vpack.c.bf16 %v789, %v787
    %v1030 = vpack.c.bf16 %v792, %v790
    %v1031 = vpack.c.bf16 %v793, %v791
    %v1032 = vpack.c.bf16 %v796, %v794
    %v1033 = vpack.c.bf16 %v797, %v795
    %v1034 = vpack.c.bf16 %v800, %v798
    %v1035 = vpack.c.bf16 %v801, %v799
    %v1036 = vpack.c.bf16 %v804, %v802
    %v1037 = vpack.c.bf16 %v805, %v803
    %v1038 = vpack.c.bf16 %v808, %v806
    %v1039 = vpack.c.bf16 %v809, %v807
    %v1040 = vpack.c.bf16 %v812, %v810
    %v1041 = vpack.c.bf16 %v813, %v811
    %v1042 = vpack.c.bf16 %v816, %v814
    %v1043 = vpack.c.bf16 %v817, %v815
    %v1044 = vpack.c.bf16 %v820, %v818
    %v1045 = vpack.c.bf16 %v821, %v819
    %v1046 = vpack.c.bf16 %v824, %v822
    %v1047 = vpack.c.bf16 %v825, %v823
    %v1048 = vpack.c.bf16 %v828, %v826
    %v1049 = vpack.c.bf16 %v829, %v827
    %v1050 = vpack.c.bf16 %v832, %v830
    %v1051 = vpack.c.bf16 %v833, %v831
    %v1052 = vpack.c.bf16 %v836, %v834
    %v1053 = vpack.c.bf16 %v837, %v835
    %v1054 = vpack.c.bf16 %v840, %v838
    %v1055 = vpack.c.bf16 %v841, %v839
    %v1056 = vpack.c.bf16 %v844, %v842
    %v1057 = vpack.c.bf16 %v845, %v843
    %v1058 = vpack.c.bf16 %v848, %v846
    %v1059 = vpack.c.bf16 %v849, %v847
    %v1060 = vpack.c.bf16 %v852, %v850
    %v1061 = vpack.c.bf16 %v853, %v851
    %v1062 = vpack.c.bf16 %v856, %v854
    %v1063 = vpack.c.bf16 %v857, %v855
    %v1064 = vpack.c.bf16 %v860, %v858
    %v1065 = vpack.c.bf16 %v861, %v859
    %v1066 = vpack.c.bf16 %v864, %v862
    %v1067 = vpack.c.bf16 %v865, %v863
    %v1068 = vpack.c.bf16 %v868, %v866
    %v1069 = vpack.c.bf16 %v869, %v867
    %v1070 = vpack.c.bf16 %v872, %v870
    %v1071 = vpack.c.bf16 %v873, %v871
    %v1072 = vpack.c.bf16 %v876, %v874
    %v1073 = vpack.c.bf16 %v877, %v875
    %v1074 = vpack.c.bf16 %v880, %v878
    %v1075 = vpack.c.bf16 %v881, %v879
    %v1076 = vpack.c.bf16 %v884, %v882
    %v1077 = vpack.c.bf16 %v885, %v883
    %v1078 = vpack.c.bf16 %v888, %v886
    %v1079 = vpack.c.bf16 %v889, %v887
    %v1080 = vpack.c.bf16 %v892, %v890
    %v1081 = vpack.c.bf16 %v893, %v891
    %v1082 = vpack.c.bf16 %v896, %v894
    %v1083 = vpack.c.bf16 %v897, %v895
    %v1084 = vpack.c.bf16 %v900, %v898
    %v1085 = vpack.c.bf16 %v901, %v899
    %v1086 = vpack.c.bf16 %v904, %v902
    %v1087 = vpack.c.bf16 %v905, %v903
    %v1088 = vpack.c.bf16 %v908, %v906
    %v1089 = vpack.c.bf16 %v909, %v907
    %v1090 = vpack.c.bf16 %v912, %v910
    %v1091 = vpack.c.bf16 %v913, %v911
    %v1092 = vpack.c.bf16 %v916, %v914
    %v1093 = vpack.c.bf16 %v917, %v915
    %v1094 = vpack.c.bf16 %v920, %v918
    %v1095 = vpack.c.bf16 %v921, %v919
    %v1096 = vpack.c.bf16 %v924, %v922
    %v1097 = vpack.c.bf16 %v925, %v923
    %v1098 = vpack.c.bf16 %v928, %v926
    %v1099 = vpack.c.bf16 %v929, %v927
    %v1100 = vpack.c.bf16 %v932, %v930
    %v1101 = vpack.c.bf16 %v933, %v931
    %v1102 = vpack.c.bf16 %v936, %v934
    %v1103 = vpack.c.bf16 %v937, %v935
    %v1104 = vpack.c.bf16 %v940, %v938
    %v1105 = vpack.c.bf16 %v941, %v939
    %v1106 = vpack.c.bf16 %v944, %v942
    %v1107 = vpack.c.bf16 %v945, %v943
    %v1108 = vpack.c.bf16 %v948, %v946
    %v1109 = vpack.c.bf16 %v949, %v947
    %v1110 = vpack.c.bf16 %v952, %v950
    %v1111 = vpack.c.bf16 %v953, %v951
    %v1112 = vpack.c.bf16 %v956, %v954
    %v1113 = vpack.c.bf16 %v957, %v955
    %v1114 = vpack.c.bf16 %v960, %v958
    %v1115 = vpack.c.bf16 %v961, %v959
    %v1116 = vpack.c.bf16 %v964, %v962
    %v1117 = vpack.c.bf16 %v965, %v963
    %v1118 = vpack.c.bf16 %v968, %v966
    %v1119 = vpack.c.bf16 %v969, %v967
    %vm1120 = vcmask 392192
    %v1122 = vsel %vm1120, %v549, 0
    %v1125 = vsel %vm1120, %v559, 0
    %v1128 = vsel %vm1120, %v569, 0
    %v1131 = vsel %vm1120, %v579, 0
    %v1134 = vsel %vm1120, %v589, 0
    %v1137 = vsel %vm1120, %v599, 0
    %v1140 = vsel %vm1120, %v609, 0
    %v1143 = vsel %vm1120, %v619, 0
    %v1146 = vsel %vm1120, %v629, 0
    %v1149 = vsel %vm1120, %v639, 0
    %v1152 = vsel %vm1120, %v649, 0
    %v1155 = vsel %vm1120, %v659, 0
    %v1158 = vsel %vm1120, %v669, 0
    %1160 = vmatpush.bf16.msra.mxu0 %v984
    %1161 = vmatpush.bf16.msra.mxu0 %v982
    %1162 = vmatpush.bf16.msra.mxu0 %v980
    %1163 = vmatpush.bf16.msra.mxu0 %v978
    %1164 = vmatpush.bf16.msra.mxu0 %v976
    %1165 = vmatpush.bf16.msra.mxu0 %v974
    %1166 = vmatpush.bf16.msra.mxu0 %v972
    %1167 = vmatpush.bf16.msra.mxu0 %v970
    %1168 = vmatmul.bf16.gmra.mxu0 %v540
    %v1169 = vpop.f32.mrf.mxu0
    %v1170 = vadd.f32 0.0, %v1169
    %v1171 = vpop.f32.mrf.mxu0
    %v1172 = vadd.f32 0.0, %v1171
    %1173 = vmatmul.bf16.gmra.mxu0 %v550
    %v1174 = vpop.f32.mrf.mxu0
    %v1175 = vadd.f32 0.0, %v1174
    %v1176 = vpop.f32.mrf.mxu0
    %v1177 = vadd.f32 0.0, %v1176
    %1178 = vmatmul.bf16.gmra.mxu0 %v560
    %v1179 = vpop.f32.mrf.mxu0
    %v1180 = vadd.f32 0.0, %v1179
    %v1181 = vpop.f32.mrf.mxu0
    %v1182 = vadd.f32 0.0, %v1181
    %1183 = vmatmul.bf16.gmra.mxu0 %v570
    %v1184 = vpop.f32.mrf.mxu0
    %v1185 = vadd.f32 0.0, %v1184
    %v1186 = vpop.f32.mrf.mxu0
    %v1187 = vadd.f32 0.0, %v1186
    %1188 = vmatmul.bf16.gmra.mxu0 %v580
    %v1189 = vpop.f32.mrf.mxu0
    %v1190 = vadd.f32 0.0, %v1189
    %v1191 = vpop.f32.mrf.mxu0
    %v1192 = vadd.f32 0.0, %v1191
    %1193 = vmatmul.bf16.gmra.mxu0 %v590
    %v1194 = vpop.f32.mrf.mxu0
    %v1195 = vadd.f32 0.0, %v1194
    %v1196 = vpop.f32.mrf.mxu0
    %v1197 = vadd.f32 0.0, %v1196
    %1198 = vmatmul.bf16.gmra.mxu0 %v600
    %v1199 = vpop.f32.mrf.mxu0
    %v1200 = vadd.f32 0.0, %v1199
    %v1201 = vpop.f32.mrf.mxu0
    %v1202 = vadd.f32 0.0, %v1201
    %1203 = vmatmul.bf16.gmra.mxu0 %v610
    %v1204 = vpop.f32.mrf.mxu0
    %v1205 = vadd.f32 0.0, %v1204
    %v1206 = vpop.f32.mrf.mxu0
    %v1207 = vadd.f32 0.0, %v1206
    %1208 = vmatmul.bf16.gmra.mxu0 %v620
    %v1209 = vpop.f32.mrf.mxu0
    %v1210 = vadd.f32 0.0, %v1209
    %v1211 = vpop.f32.mrf.mxu0
    %v1212 = vadd.f32 0.0, %v1211
    %1213 = vmatmul.bf16.gmra.mxu0 %v630
    %v1214 = vpop.f32.mrf.mxu0
    %v1215 = vadd.f32 0.0, %v1214
    %v1216 = vpop.f32.mrf.mxu0
    %v1217 = vadd.f32 0.0, %v1216
    %1218 = vmatmul.bf16.gmra.mxu0 %v640
    %v1219 = vpop.f32.mrf.mxu0
    %v1220 = vadd.f32 0.0, %v1219
    %v1221 = vpop.f32.mrf.mxu0
    %v1222 = vadd.f32 0.0, %v1221
    %1223 = vmatmul.bf16.gmra.mxu0 %v650
    %v1224 = vpop.f32.mrf.mxu0
    %v1225 = vadd.f32 0.0, %v1224
    %v1226 = vpop.f32.mrf.mxu0
    %v1227 = vadd.f32 0.0, %v1226
    %1228 = vmatmul.bf16.gmra.mxu0 %v660
    %v1229 = vpop.f32.mrf.mxu0
    %v1230 = vadd.f32 0.0, %v1229
    %v1231 = vpop.f32.mrf.mxu0
    %1232 = vdwg.mxu0
    %1233 = vmatpush.bf16.msra.mxu0 %v1000
    %1234 = vmatpush.bf16.msra.mxu0 %v998
    %1235 = vmatpush.bf16.msra.mxu0 %v996
    %1236 = vmatpush.bf16.msra.mxu0 %v994
    %1237 = vmatpush.bf16.msra.mxu0 %v992
    %1238 = vmatpush.bf16.msra.mxu0 %v990
    %1239 = vmatpush.bf16.msra.mxu0 %v988
    %1240 = vmatpush.bf16.msra.mxu0 %v986
    %1241 = vmatmul.bf16.gmra.mxu0 %v541
    %v1242 = vpop.f32.mrf.mxu0
    %v1243 = vadd.f32 %v1170, %v1242
    %v1244 = vpop.f32.mrf.mxu0
    %v1245 = vadd.f32 %v1172, %v1244
    %1246 = vmatmul.bf16.gmra.mxu0 %v551
    %v1247 = vpop.f32.mrf.mxu0
    %v1248 = vadd.f32 %v1175, %v1247
    %v1249 = vpop.f32.mrf.mxu0
    %v1250 = vadd.f32 %v1177, %v1249
    %1251 = vmatmul.bf16.gmra.mxu0 %v561
    %v1252 = vpop.f32.mrf.mxu0
    %v1253 = vadd.f32 %v1180, %v1252
    %v1254 = vpop.f32.mrf.mxu0
    %v1255 = vadd.f32 %v1182, %v1254
    %1256 = vmatmul.bf16.gmra.mxu0 %v571
    %v1257 = vpop.f32.mrf.mxu0
    %v1258 = vadd.f32 %v1185, %v1257
    %v1259 = vpop.f32.mrf.mxu0
    %v1260 = vadd.f32 %v1187, %v1259
    %1261 = vmatmul.bf16.gmra.mxu0 %v581
    %v1262 = vpop.f32.mrf.mxu0
    %v1263 = vadd.f32 %v1190, %v1262
    %v1264 = vpop.f32.mrf.mxu0
    %v1265 = vadd.f32 %v1192, %v1264
    %1266 = vmatmul.bf16.gmra.mxu0 %v591
    %v1267 = vpop.f32.mrf.mxu0
    %v1268 = vadd.f32 %v1195, %v1267
    %v1269 = vpop.f32.mrf.mxu0
    %v1270 = vadd.f32 %v1197, %v1269
    %1271 = vmatmul.bf16.gmra.mxu0 %v601
    %v1272 = vpop.f32.mrf.mxu0
    %v1273 = vadd.f32 %v1200, %v1272
    %v1274 = vpop.f32.mrf.mxu0
    %v1275 = vadd.f32 %v1202, %v1274
    %1276 = vmatmul.bf16.gmra.mxu0 %v611
    %v1277 = vpop.f32.mrf.mxu0
    %v1278 = vadd.f32 %v1205, %v1277
    %v1279 = vpop.f32.mrf.mxu0
    %v1280 = vadd.f32 %v1207, %v1279
    %1281 = vmatmul.bf16.gmra.mxu0 %v621
    %v1282 = vpop.f32.mrf.mxu0
    %v1283 = vadd.f32 %v1210, %v1282
    %v1284 = vpop.f32.mrf.mxu0
    %v1285 = vadd.f32 %v1212, %v1284
    %1286 = vmatmul.bf16.gmra.mxu0 %v631
    %v1287 = vpop.f32.mrf.mxu0
    %v1288 = vadd.f32 %v1215, %v1287
    %v1289 = vpop.f32.mrf.mxu0
    %v1290 = vadd.f32 %v1217, %v1289
    %1291 = vmatmul.bf16.gmra.mxu0 %v641
    %v1292 = vpop.f32.mrf.mxu0
    %v1293 = vadd.f32 %v1220, %v1292
    %v1294 = vpop.f32.mrf.mxu0
    %v1295 = vadd.f32 %v1222, %v1294
    %1296 = vmatmul.bf16.gmra.mxu0 %v651
    %v1297 = vpop.f32.mrf.mxu0
    %v1298 = vadd.f32 %v1225, %v1297
    %v1299 = vpop.f32.mrf.mxu0
    %v1300 = vadd.f32 %v1227, %v1299
    %1301 = vmatmul.bf16.gmra.mxu0 %v661
    %v1302 = vpop.f32.mrf.mxu0
    %v1303 = vadd.f32 %v1230, %v1302
    %v1304 = vpop.f32.mrf.mxu0
    %1305 = vdwg.mxu0
    %1306 = vmatpush.bf16.msra.mxu0 %v1016
    %1307 = vmatpush.bf16.msra.mxu0 %v1014
    %1308 = vmatpush.bf16.msra.mxu0 %v1012
    %1309 = vmatpush.bf16.msra.mxu0 %v1010
    %1310 = vmatpush.bf16.msra.mxu0 %v1008
    %1311 = vmatpush.bf16.msra.mxu0 %v1006
    %1312 = vmatpush.bf16.msra.mxu0 %v1004
    %1313 = vmatpush.bf16.msra.mxu0 %v1002
    %1314 = vmatmul.bf16.gmra.mxu0 %v542
    %v1315 = vpop.f32.mrf.mxu0
    %v1316 = vadd.f32 %v1243, %v1315
    %v1317 = vpop.f32.mrf.mxu0
    %v1318 = vadd.f32 %v1245, %v1317
    %1319 = vmatmul.bf16.gmra.mxu0 %v552
    %v1320 = vpop.f32.mrf.mxu0
    %v1321 = vadd.f32 %v1248, %v1320
    %v1322 = vpop.f32.mrf.mxu0
    %v1323 = vadd.f32 %v1250, %v1322
    %1324 = vmatmul.bf16.gmra.mxu0 %v562
    %v1325 = vpop.f32.mrf.mxu0
    %v1326 = vadd.f32 %v1253, %v1325
    %v1327 = vpop.f32.mrf.mxu0
    %v1328 = vadd.f32 %v1255, %v1327
    %1329 = vmatmul.bf16.gmra.mxu0 %v572
    %v1330 = vpop.f32.mrf.mxu0
    %v1331 = vadd.f32 %v1258, %v1330
    %v1332 = vpop.f32.mrf.mxu0
    %v1333 = vadd.f32 %v1260, %v1332
    %1334 = vmatmul.bf16.gmra.mxu0 %v582
    %v1335 = vpop.f32.mrf.mxu0
    %v1336 = vadd.f32 %v1263, %v1335
    %v1337 = vpop.f32.mrf.mxu0
    %v1338 = vadd.f32 %v1265, %v1337
    %1339 = vmatmul.bf16.gmra.mxu0 %v592
    %v1340 = vpop.f32.mrf.mxu0
    %v1341 = vadd.f32 %v1268, %v1340
    %v1342 = vpop.f32.mrf.mxu0
    %v1343 = vadd.f32 %v1270, %v1342
    %1344 = vmatmul.bf16.gmra.mxu0 %v602
    %v1345 = vpop.f32.mrf.mxu0
    %v1346 = vadd.f32 %v1273, %v1345
    %v1347 = vpop.f32.mrf.mxu0
    %v1348 = vadd.f32 %v1275, %v1347
    %1349 = vmatmul.bf16.gmra.mxu0 %v612
    %v1350 = vpop.f32.mrf.mxu0
    %v1351 = vadd.f32 %v1278, %v1350
    %v1352 = vpop.f32.mrf.mxu0
    %v1353 = vadd.f32 %v1280, %v1352
    %1354 = vmatmul.bf16.gmra.mxu0 %v622
    %v1355 = vpop.f32.mrf.mxu0
    %v1356 = vadd.f32 %v1283, %v1355
    %v1357 = vpop.f32.mrf.mxu0
    %v1358 = vadd.f32 %v1285, %v1357
    %1359 = vmatmul.bf16.gmra.mxu0 %v632
    %v1360 = vpop.f32.mrf.mxu0
    %v1361 = vadd.f32 %v1288, %v1360
    %v1362 = vpop.f32.mrf.mxu0
    %v1363 = vadd.f32 %v1290, %v1362
    %1364 = vmatmul.bf16.gmra.mxu0 %v642
    %v1365 = vpop.f32.mrf.mxu0
    %v1366 = vadd.f32 %v1293, %v1365
    %v1367 = vpop.f32.mrf.mxu0
    %v1368 = vadd.f32 %v1295, %v1367
    %1369 = vmatmul.bf16.gmra.mxu0 %v652
    %v1370 = vpop.f32.mrf.mxu0
    %v1371 = vadd.f32 %v1298, %v1370
    %v1372 = vpop.f32.mrf.mxu0
    %v1373 = vadd.f32 %v1300, %v1372
    %1374 = vmatmul.bf16.gmra.mxu0 %v662
    %v1375 = vpop.f32.mrf.mxu0
    %v1376 = vadd.f32 %v1303, %v1375
    %v1377 = vpop.f32.mrf.mxu0
    %1378 = vdwg.mxu0
    %1379 = vmatpush.bf16.msra.mxu0 %v1032
    %1380 = vmatpush.bf16.msra.mxu0 %v1030
    %1381 = vmatpush.bf16.msra.mxu0 %v1028
    %1382 = vmatpush.bf16.msra.mxu0 %v1026
    %1383 = vmatpush.bf16.msra.mxu0 %v1024
    %1384 = vmatpush.bf16.msra.mxu0 %v1022
    %1385 = vmatpush.bf16.msra.mxu0 %v1020
    %1386 = vmatpush.bf16.msra.mxu0 %v1018
    %1387 = vmatmul.bf16.gmra.mxu0 %v543
    %v1388 = vpop.f32.mrf.mxu0
    %v1389 = vadd.f32 %v1316, %v1388
    %v1390 = vpop.f32.mrf.mxu0
    %v1391 = vadd.f32 %v1318, %v1390
    %1392 = vmatmul.bf16.gmra.mxu0 %v553
    %v1393 = vpop.f32.mrf.mxu0
    %v1394 = vadd.f32 %v1321, %v1393
    %v1395 = vpop.f32.mrf.mxu0
    %v1396 = vadd.f32 %v1323, %v1395
    %1397 = vmatmul.bf16.gmra.mxu0 %v563
    %v1398 = vpop.f32.mrf.mxu0
    %v1399 = vadd.f32 %v1326, %v1398
    %v1400 = vpop.f32.mrf.mxu0
    %v1401 = vadd.f32 %v1328, %v1400
    %1402 = vmatmul.bf16.gmra.mxu0 %v573
    %v1403 = vpop.f32.mrf.mxu0
    %v1404 = vadd.f32 %v1331, %v1403
    %v1405 = vpop.f32.mrf.mxu0
    %v1406 = vadd.f32 %v1333, %v1405
    %1407 = vmatmul.bf16.gmra.mxu0 %v583
    %v1408 = vpop.f32.mrf.mxu0
    %v1409 = vadd.f32 %v1336, %v1408
    %v1410 = vpop.f32.mrf.mxu0
    %v1411 = vadd.f32 %v1338, %v1410
    %1412 = vmatmul.bf16.gmra.mxu0 %v593
    %v1413 = vpop.f32.mrf.mxu0
    %v1414 = vadd.f32 %v1341, %v1413
    %v1415 = vpop.f32.mrf.mxu0
    %v1416 = vadd.f32 %v1343, %v1415
    %1417 = vmatmul.bf16.gmra.mxu0 %v603
    %v1418 = vpop.f32.mrf.mxu0
    %v1419 = vadd.f32 %v1346, %v1418
    %v1420 = vpop.f32.mrf.mxu0
    %v1421 = vadd.f32 %v1348, %v1420
    %1422 = vmatmul.bf16.gmra.mxu0 %v613
    %v1423 = vpop.f32.mrf.mxu0
    %v1424 = vadd.f32 %v1351, %v1423
    %v1425 = vpop.f32.mrf.mxu0
    %v1426 = vadd.f32 %v1353, %v1425
    %1427 = vmatmul.bf16.gmra.mxu0 %v623
    %v1428 = vpop.f32.mrf.mxu0
    %v1429 = vadd.f32 %v1356, %v1428
    %v1430 = vpop.f32.mrf.mxu0
    %v1431 = vadd.f32 %v1358, %v1430
    %1432 = vmatmul.bf16.gmra.mxu0 %v633
    %v1433 = vpop.f32.mrf.mxu0
    %v1434 = vadd.f32 %v1361, %v1433
    %v1435 = vpop.f32.mrf.mxu0
    %v1436 = vadd.f32 %v1363, %v1435
    %1437 = vmatmul.bf16.gmra.mxu0 %v643
    %v1438 = vpop.f32.mrf.mxu0
    %v1439 = vadd.f32 %v1366, %v1438
    %v1440 = vpop.f32.mrf.mxu0
    %v1441 = vadd.f32 %v1368, %v1440
    %1442 = vmatmul.bf16.gmra.mxu0 %v653
    %v1443 = vpop.f32.mrf.mxu0
    %v1444 = vadd.f32 %v1371, %v1443
    %v1445 = vpop.f32.mrf.mxu0
    %v1446 = vadd.f32 %v1373, %v1445
    %1447 = vmatmul.bf16.gmra.mxu0 %v663
    %v1448 = vpop.f32.mrf.mxu0
    %v1449 = vadd.f32 %v1376, %v1448
    %v1450 = vpop.f32.mrf.mxu0
    %1451 = vdwg.mxu0
    %1452 = vmatpush.bf16.msra.mxu0 %v1048
    %1453 = vmatpush.bf16.msra.mxu0 %v1046
    %1454 = vmatpush.bf16.msra.mxu0 %v1044
    %1455 = vmatpush.bf16.msra.mxu0 %v1042
    %1456 = vmatpush.bf16.msra.mxu0 %v1040
    %1457 = vmatpush.bf16.msra.mxu0 %v1038
    %1458 = vmatpush.bf16.msra.mxu0 %v1036
    %1459 = vmatpush.bf16.msra.mxu0 %v1034
    %1460 = vmatmul.bf16.gmra.mxu0 %v544
    %v1461 = vpop.f32.mrf.mxu0
    %v1462 = vadd.f32 %v1389, %v1461
    %v1463 = vpop.f32.mrf.mxu0
    %v1464 = vadd.f32 %v1391, %v1463
    %1465 = vmatmul.bf16.gmra.mxu0 %v554
    %v1466 = vpop.f32.mrf.mxu0
    %v1467 = vadd.f32 %v1394, %v1466
    %v1468 = vpop.f32.mrf.mxu0
    %v1469 = vadd.f32 %v1396, %v1468
    %1470 = vmatmul.bf16.gmra.mxu0 %v564
    %v1471 = vpop.f32.mrf.mxu0
    %v1472 = vadd.f32 %v1399, %v1471
    %v1473 = vpop.f32.mrf.mxu0
    %v1474 = vadd.f32 %v1401, %v1473
    %1475 = vmatmul.bf16.gmra.mxu0 %v574
    %v1476 = vpop.f32.mrf.mxu0
    %v1477 = vadd.f32 %v1404, %v1476
    %v1478 = vpop.f32.mrf.mxu0
    %v1479 = vadd.f32 %v1406, %v1478
    %1480 = vmatmul.bf16.gmra.mxu0 %v584
    %v1481 = vpop.f32.mrf.mxu0
    %v1482 = vadd.f32 %v1409, %v1481
    %v1483 = vpop.f32.mrf.mxu0
    %v1484 = vadd.f32 %v1411, %v1483
    %1485 = vmatmul.bf16.gmra.mxu0 %v594
    %v1486 = vpop.f32.mrf.mxu0
    %v1487 = vadd.f32 %v1414, %v1486
    %v1488 = vpop.f32.mrf.mxu0
    %v1489 = vadd.f32 %v1416, %v1488
    %1490 = vmatmul.bf16.gmra.mxu0 %v604
    %v1491 = vpop.f32.mrf.mxu0
    %v1492 = vadd.f32 %v1419, %v1491
    %v1493 = vpop.f32.mrf.mxu0
    %v1494 = vadd.f32 %v1421, %v1493
    %1495 = vmatmul.bf16.gmra.mxu0 %v614
    %v1496 = vpop.f32.mrf.mxu0
    %v1497 = vadd.f32 %v1424, %v1496
    %v1498 = vpop.f32.mrf.mxu0
    %v1499 = vadd.f32 %v1426, %v1498
    %1500 = vmatmul.bf16.gmra.mxu0 %v624
    %v1501 = vpop.f32.mrf.mxu0
    %v1502 = vadd.f32 %v1429, %v1501
    %v1503 = vpop.f32.mrf.mxu0
    %v1504 = vadd.f32 %v1431, %v1503
    %1505 = vmatmul.bf16.gmra.mxu0 %v634
    %v1506 = vpop.f32.mrf.mxu0
    %v1507 = vadd.f32 %v1434, %v1506
    %v1508 = vpop.f32.mrf.mxu0
    %v1509 = vadd.f32 %v1436, %v1508
    %1510 = vmatmul.bf16.gmra.mxu0 %v644
    %v1511 = vpop.f32.mrf.mxu0
    %v1512 = vadd.f32 %v1439, %v1511
    %v1513 = vpop.f32.mrf.mxu0
    %v1514 = vadd.f32 %v1441, %v1513
    %1515 = vmatmul.bf16.gmra.mxu0 %v654
    %v1516 = vpop.f32.mrf.mxu0
    %v1517 = vadd.f32 %v1444, %v1516
    %v1518 = vpop.f32.mrf.mxu0
    %v1519 = vadd.f32 %v1446, %v1518
    %1520 = vmatmul.bf16.gmra.mxu0 %v664
    %v1521 = vpop.f32.mrf.mxu0
    %v1522 = vadd.f32 %v1449, %v1521
    %v1523 = vpop.f32.mrf.mxu0
    %1524 = vdwg.mxu0
    %1525 = vmatpush.bf16.msra.mxu0 %v1064
    %1526 = vmatpush.bf16.msra.mxu0 %v1062
    %1527 = vmatpush.bf16.msra.mxu0 %v1060
    %1528 = vmatpush.bf16.msra.mxu0 %v1058
    %1529 = vmatpush.bf16.msra.mxu0 %v1056
    %1530 = vmatpush.bf16.msra.mxu0 %v1054
    %1531 = vmatpush.bf16.msra.mxu0 %v1052
    %1532 = vmatpush.bf16.msra.mxu0 %v1050
    %1533 = vmatmul.bf16.gmra.mxu0 %v545
    %v1534 = vpop.f32.mrf.mxu0
    %v1535 = vadd.f32 %v1462, %v1534
    %v1536 = vpop.f32.mrf.mxu0
    %v1537 = vadd.f32 %v1464, %v1536
    %1538 = vmatmul.bf16.gmra.mxu0 %v555
    %v1539 = vpop.f32.mrf.mxu0
    %v1540 = vadd.f32 %v1467, %v1539
    %v1541 = vpop.f32.mrf.mxu0
    %v1542 = vadd.f32 %v1469, %v1541
    %1543 = vmatmul.bf16.gmra.mxu0 %v565
    %v1544 = vpop.f32.mrf.mxu0
    %v1545 = vadd.f32 %v1472, %v1544
    %v1546 = vpop.f32.mrf.mxu0
    %v1547 = vadd.f32 %v1474, %v1546
    %1548 = vmatmul.bf16.gmra.mxu0 %v575
    %v1549 = vpop.f32.mrf.mxu0
    %v1550 = vadd.f32 %v1477, %v1549
    %v1551 = vpop.f32.mrf.mxu0
    %v1552 = vadd.f32 %v1479, %v1551
    %1553 = vmatmul.bf16.gmra.mxu0 %v585
    %v1554 = vpop.f32.mrf.mxu0
    %v1555 = vadd.f32 %v1482, %v1554
    %v1556 = vpop.f32.mrf.mxu0
    %v1557 = vadd.f32 %v1484, %v1556
    %1558 = vmatmul.bf16.gmra.mxu0 %v595
    %v1559 = vpop.f32.mrf.mxu0
    %v1560 = vadd.f32 %v1487, %v1559
    %v1561 = vpop.f32.mrf.mxu0
    %v1562 = vadd.f32 %v1489, %v1561
    %1563 = vmatmul.bf16.gmra.mxu0 %v605
    %v1564 = vpop.f32.mrf.mxu0
    %v1565 = vadd.f32 %v1492, %v1564
    %v1566 = vpop.f32.mrf.mxu0
    %v1567 = vadd.f32 %v1494, %v1566
    %1568 = vmatmul.bf16.gmra.mxu0 %v615
    %v1569 = vpop.f32.mrf.mxu0
    %v1570 = vadd.f32 %v1497, %v1569
    %v1571 = vpop.f32.mrf.mxu0
    %v1572 = vadd.f32 %v1499, %v1571
    %1573 = vmatmul.bf16.gmra.mxu0 %v625
    %v1574 = vpop.f32.mrf.mxu0
    %v1575 = vadd.f32 %v1502, %v1574
    %v1576 = vpop.f32.mrf.mxu0
    %v1577 = vadd.f32 %v1504, %v1576
    %1578 = vmatmul.bf16.gmra.mxu0 %v635
    %v1579 = vpop.f32.mrf.mxu0
    %v1580 = vadd.f32 %v1507, %v1579
    %v1581 = vpop.f32.mrf.mxu0
    %v1582 = vadd.f32 %v1509, %v1581
    %1583 = vmatmul.bf16.gmra.mxu0 %v645
    %v1584 = vpop.f32.mrf.mxu0
    %v1585 = vadd.f32 %v1512, %v1584
    %v1586 = vpop.f32.mrf.mxu0
    %v1587 = vadd.f32 %v1514, %v1586
    %1588 = vmatmul.bf16.gmra.mxu0 %v655
    %v1589 = vpop.f32.mrf.mxu0
    %v1590 = vadd.f32 %v1517, %v1589
    %v1591 = vpop.f32.mrf.mxu0
    %v1592 = vadd.f32 %v1519, %v1591
    %1593 = vmatmul.bf16.gmra.mxu0 %v665
    %v1594 = vpop.f32.mrf.mxu0
    %v1595 = vadd.f32 %v1522, %v1594
    %v1596 = vpop.f32.mrf.mxu0
    %1597 = vdwg.mxu0
    %1598 = vmatpush.bf16.msra.mxu0 %v1080
    %1599 = vmatpush.bf16.msra.mxu0 %v1078
    %1600 = vmatpush.bf16.msra.mxu0 %v1076
    %1601 = vmatpush.bf16.msra.mxu0 %v1074
    %1602 = vmatpush.bf16.msra.mxu0 %v1072
    %1603 = vmatpush.bf16.msra.mxu0 %v1070
    %1604 = vmatpush.bf16.msra.mxu0 %v1068
    %1605 = vmatpush.bf16.msra.mxu0 %v1066
    %1606 = vmatmul.bf16.gmra.mxu0 %v546
    %v1607 = vpop.f32.mrf.mxu0
    %v1608 = vadd.f32 %v1535, %v1607
    %v1609 = vpop.f32.mrf.mxu0
    %v1610 = vadd.f32 %v1537, %v1609
    %1611 = vmatmul.bf16.gmra.mxu0 %v556
    %v1612 = vpop.f32.mrf.mxu0
    %v1613 = vadd.f32 %v1540, %v1612
    %v1614 = vpop.f32.mrf.mxu0
    %v1615 = vadd.f32 %v1542, %v1614
    %1616 = vmatmul.bf16.gmra.mxu0 %v566
    %v1617 = vpop.f32.mrf.mxu0
    %v1618 = vadd.f32 %v1545, %v1617
    %v1619 = vpop.f32.mrf.mxu0
    %v1620 = vadd.f32 %v1547, %v1619
    %1621 = vmatmul.bf16.gmra.mxu0 %v576
    %v1622 = vpop.f32.mrf.mxu0
    %v1623 = vadd.f32 %v1550, %v1622
    %v1624 = vpop.f32.mrf.mxu0
    %v1625 = vadd.f32 %v1552, %v1624
    %1626 = vmatmul.bf16.gmra.mxu0 %v586
    %v1627 = vpop.f32.mrf.mxu0
    %v1628 = vadd.f32 %v1555, %v1627
    %v1629 = vpop.f32.mrf.mxu0
    %v1630 = vadd.f32 %v1557, %v1629
    %1631 = vmatmul.bf16.gmra.mxu0 %v596
    %v1632 = vpop.f32.mrf.mxu0
    %v1633 = vadd.f32 %v1560, %v1632
    %v1634 = vpop.f32.mrf.mxu0
    %v1635 = vadd.f32 %v1562, %v1634
    %1636 = vmatmul.bf16.gmra.mxu0 %v606
    %v1637 = vpop.f32.mrf.mxu0
    %v1638 = vadd.f32 %v1565, %v1637
    %v1639 = vpop.f32.mrf.mxu0
    %v1640 = vadd.f32 %v1567, %v1639
    %1641 = vmatmul.bf16.gmra.mxu0 %v616
    %v1642 = vpop.f32.mrf.mxu0
    %v1643 = vadd.f32 %v1570, %v1642
    %v1644 = vpop.f32.mrf.mxu0
    %v1645 = vadd.f32 %v1572, %v1644
    %1646 = vmatmul.bf16.gmra.mxu0 %v626
    %v1647 = vpop.f32.mrf.mxu0
    %v1648 = vadd.f32 %v1575, %v1647
    %v1649 = vpop.f32.mrf.mxu0
    %v1650 = vadd.f32 %v1577, %v1649
    %1651 = vmatmul.bf16.gmra.mxu0 %v636
    %v1652 = vpop.f32.mrf.mxu0
    %v1653 = vadd.f32 %v1580, %v1652
    %v1654 = vpop.f32.mrf.mxu0
    %v1655 = vadd.f32 %v1582, %v1654
    %1656 = vmatmul.bf16.gmra.mxu0 %v646
    %v1657 = vpop.f32.mrf.mxu0
    %v1658 = vadd.f32 %v1585, %v1657
    %v1659 = vpop.f32.mrf.mxu0
    %v1660 = vadd.f32 %v1587, %v1659
    %1661 = vmatmul.bf16.gmra.mxu0 %v656
    %v1662 = vpop.f32.mrf.mxu0
    %v1663 = vadd.f32 %v1590, %v1662
    %v1664 = vpop.f32.mrf.mxu0
    %v1665 = vadd.f32 %v1592, %v1664
    %1666 = vmatmul.bf16.gmra.mxu0 %v666
    %v1667 = vpop.f32.mrf.mxu0
    %v1668 = vadd.f32 %v1595, %v1667
    %v1669 = vpop.f32.mrf.mxu0
    %1670 = vdwg.mxu0
    %1671 = vmatpush.bf16.msra.mxu0 %v1096
    %1672 = vmatpush.bf16.msra.mxu0 %v1094
    %1673 = vmatpush.bf16.msra.mxu0 %v1092
    %1674 = vmatpush.bf16.msra.mxu0 %v1090
    %1675 = vmatpush.bf16.msra.mxu0 %v1088
    %1676 = vmatpush.bf16.msra.mxu0 %v1086
    %1677 = vmatpush.bf16.msra.mxu0 %v1084
    %1678 = vmatpush.bf16.msra.mxu0 %v1082
    %1679 = vmatmul.bf16.gmra.mxu0 %v547
    %v1680 = vpop.f32.mrf.mxu0
    %v1681 = vadd.f32 %v1608, %v1680
    %v1682 = vpop.f32.mrf.mxu0
    %v1683 = vadd.f32 %v1610, %v1682
    %1684 = vmatmul.bf16.gmra.mxu0 %v557
    %v1685 = vpop.f32.mrf.mxu0
    %v1686 = vadd.f32 %v1613, %v1685
    %v1687 = vpop.f32.mrf.mxu0
    %v1688 = vadd.f32 %v1615, %v1687
    %1689 = vmatmul.bf16.gmra.mxu0 %v567
    %v1690 = vpop.f32.mrf.mxu0
    %v1691 = vadd.f32 %v1618, %v1690
    %v1692 = vpop.f32.mrf.mxu0
    %v1693 = vadd.f32 %v1620, %v1692
    %1694 = vmatmul.bf16.gmra.mxu0 %v577
    %v1695 = vpop.f32.mrf.mxu0
    %v1696 = vadd.f32 %v1623, %v1695
    %v1697 = vpop.f32.mrf.mxu0
    %v1698 = vadd.f32 %v1625, %v1697
    %1699 = vmatmul.bf16.gmra.mxu0 %v587
    %v1700 = vpop.f32.mrf.mxu0
    %v1701 = vadd.f32 %v1628, %v1700
    %v1702 = vpop.f32.mrf.mxu0
    %v1703 = vadd.f32 %v1630, %v1702
    %1704 = vmatmul.bf16.gmra.mxu0 %v597
    %v1705 = vpop.f32.mrf.mxu0
    %v1706 = vadd.f32 %v1633, %v1705
    %v1707 = vpop.f32.mrf.mxu0
    %v1708 = vadd.f32 %v1635, %v1707
    %1709 = vmatmul.bf16.gmra.mxu0 %v607
    %v1710 = vpop.f32.mrf.mxu0
    %v1711 = vadd.f32 %v1638, %v1710
    %v1712 = vpop.f32.mrf.mxu0
    %v1713 = vadd.f32 %v1640, %v1712
    %1714 = vmatmul.bf16.gmra.mxu0 %v617
    %v1715 = vpop.f32.mrf.mxu0
    %v1716 = vadd.f32 %v1643, %v1715
    %v1717 = vpop.f32.mrf.mxu0
    %v1718 = vadd.f32 %v1645, %v1717
    %1719 = vmatmul.bf16.gmra.mxu0 %v627
    %v1720 = vpop.f32.mrf.mxu0
    %v1721 = vadd.f32 %v1648, %v1720
    %v1722 = vpop.f32.mrf.mxu0
    %v1723 = vadd.f32 %v1650, %v1722
    %1724 = vmatmul.bf16.gmra.mxu0 %v637
    %v1725 = vpop.f32.mrf.mxu0
    %v1726 = vadd.f32 %v1653, %v1725
    %v1727 = vpop.f32.mrf.mxu0
    %v1728 = vadd.f32 %v1655, %v1727
    %1729 = vmatmul.bf16.gmra.mxu0 %v647
    %v1730 = vpop.f32.mrf.mxu0
    %v1731 = vadd.f32 %v1658, %v1730
    %v1732 = vpop.f32.mrf.mxu0
    %v1733 = vadd.f32 %v1660, %v1732
    %1734 = vmatmul.bf16.gmra.mxu0 %v657
    %v1735 = vpop.f32.mrf.mxu0
    %v1736 = vadd.f32 %v1663, %v1735
    %v1737 = vpop.f32.mrf.mxu0
    %v1738 = vadd.f32 %v1665, %v1737
    %1739 = vmatmul.bf16.gmra.mxu0 %v667
    %v1740 = vpop.f32.mrf.mxu0
    %v1741 = vadd.f32 %v1668, %v1740
    %v1742 = vpop.f32.mrf.mxu0
    %1743 = vdwg.mxu0
    %1744 = vmatpush.bf16.msra.mxu0 %v1112
    %1745 = vmatpush.bf16.msra.mxu0 %v1110
    %1746 = vmatpush.bf16.msra.mxu0 %v1108
    %1747 = vmatpush.bf16.msra.mxu0 %v1106
    %1748 = vmatpush.bf16.msra.mxu0 %v1104
    %1749 = vmatpush.bf16.msra.mxu0 %v1102
    %1750 = vmatpush.bf16.msra.mxu0 %v1100
    %1751 = vmatpush.bf16.msra.mxu0 %v1098
    %1752 = vmatmul.bf16.gmra.mxu0 %v548
    %v1753 = vpop.f32.mrf.mxu0
    %v1754 = vadd.f32 %v1681, %v1753
    %v1755 = vpop.f32.mrf.mxu0
    %v1756 = vadd.f32 %v1683, %v1755
    %1757 = vmatmul.bf16.gmra.mxu0 %v558
    %v1758 = vpop.f32.mrf.mxu0
    %v1759 = vadd.f32 %v1686, %v1758
    %v1760 = vpop.f32.mrf.mxu0
    %v1761 = vadd.f32 %v1688, %v1760
    %1762 = vmatmul.bf16.gmra.mxu0 %v568
    %v1763 = vpop.f32.mrf.mxu0
    %v1764 = vadd.f32 %v1691, %v1763
    %v1765 = vpop.f32.mrf.mxu0
    %v1766 = vadd.f32 %v1693, %v1765
    %1767 = vmatmul.bf16.gmra.mxu0 %v578
    %v1768 = vpop.f32.mrf.mxu0
    %v1769 = vadd.f32 %v1696, %v1768
    %v1770 = vpop.f32.mrf.mxu0
    %v1771 = vadd.f32 %v1698, %v1770
    %1772 = vmatmul.bf16.gmra.mxu0 %v588
    %v1773 = vpop.f32.mrf.mxu0
    %v1774 = vadd.f32 %v1701, %v1773
    %v1775 = vpop.f32.mrf.mxu0
    %v1776 = vadd.f32 %v1703, %v1775
    %1777 = vmatmul.bf16.gmra.mxu0 %v598
    %v1778 = vpop.f32.mrf.mxu0
    %v1779 = vadd.f32 %v1706, %v1778
    %v1780 = vpop.f32.mrf.mxu0
    %v1781 = vadd.f32 %v1708, %v1780
    %1782 = vmatmul.bf16.gmra.mxu0 %v608
    %v1783 = vpop.f32.mrf.mxu0
    %v1784 = vadd.f32 %v1711, %v1783
    %v1785 = vpop.f32.mrf.mxu0
    %v1786 = vadd.f32 %v1713, %v1785
    %1787 = vmatmul.bf16.gmra.mxu0 %v618
    %v1788 = vpop.f32.mrf.mxu0
    %v1789 = vadd.f32 %v1716, %v1788
    %v1790 = vpop.f32.mrf.mxu0
    %v1791 = vadd.f32 %v1718, %v1790
    %1792 = vmatmul.bf16.gmra.mxu0 %v628
    %v1793 = vpop.f32.mrf.mxu0
    %v1794 = vadd.f32 %v1721, %v1793
    %v1795 = vpop.f32.mrf.mxu0
    %v1796 = vadd.f32 %v1723, %v1795
    %1797 = vmatmul.bf16.gmra.mxu0 %v638
    %v1798 = vpop.f32.mrf.mxu0
    %v1799 = vadd.f32 %v1726, %v1798
    %v1800 = vpop.f32.mrf.mxu0
    %v1801 = vadd.f32 %v1728, %v1800
    %1802 = vmatmul.bf16.gmra.mxu0 %v648
    %v1803 = vpop.f32.mrf.mxu0
    %v1804 = vadd.f32 %v1731, %v1803
    %v1805 = vpop.f32.mrf.mxu0
    %v1806 = vadd.f32 %v1733, %v1805
    %1807 = vmatmul.bf16.gmra.mxu0 %v658
    %v1808 = vpop.f32.mrf.mxu0
    %v1809 = vadd.f32 %v1736, %v1808
    %v1810 = vpop.f32.mrf.mxu0
    %v1811 = vadd.f32 %v1738, %v1810
    %1812 = vmatmul.bf16.gmra.mxu0 %v668
    %v1813 = vpop.f32.mrf.mxu0
    %v1814 = vadd.f32 %v1741, %v1813
    %v1815 = vpop.f32.mrf.mxu0
    %1816 = vdwg.mxu0
    %1817 = vmatpush.bf16.msra.mxu0 0
    %1818 = vmatpush.bf16.msra.mxu0 0
    %1819 = vmatpush.bf16.msra.mxu0 0
    %1820 = vmatpush.bf16.msra.mxu0 0
    %1821 = vmatpush.bf16.msra.mxu0 0
    %1822 = vmatpush.bf16.msra.mxu0 %v1118
    %1823 = vmatpush.bf16.msra.mxu0 %v1116
    %1824 = vmatpush.bf16.msra.mxu0 %v1114
    %1825 = vmatmul.bf16.gmra.mxu0 %v1122
    %v1826 = vpop.f32.mrf.mxu0
    %v1827 = vadd.f32 %v1754, %v1826
    %v1828 = vpop.f32.mrf.mxu0
    %v1829 = vadd.f32 %v1756, %v1828
    %1830 = vmatmul.bf16.gmra.mxu0 %v1125
    %v1831 = vpop.f32.mrf.mxu0
    %v1832 = vadd.f32 %v1759, %v1831
    %v1833 = vpop.f32.mrf.mxu0
    %v1834 = vadd.f32 %v1761, %v1833
    %1835 = vmatmul.bf16.gmra.mxu0 %v1128
    %v1836 = vpop.f32.mrf.mxu0
    %v1837 = vadd.f32 %v1764, %v1836
    %v1838 = vpop.f32.mrf.mxu0
    %v1839 = vadd.f32 %v1766, %v1838
    %1840 = vmatmul.bf16.gmra.mxu0 %v1131
    %v1841 = vpop.f32.mrf.mxu0
    %v1842 = vadd.f32 %v1769, %v1841
    %v1843 = vpop.f32.mrf.mxu0
    %v1844 = vadd.f32 %v1771, %v1843
    %1845 = vmatmul.bf16.gmra.mxu0 %v1134
    %v1846 = vpop.f32.mrf.mxu0
    %v1847 = vadd.f32 %v1774, %v1846
    %v1848 = vpop.f32.mrf.mxu0
    %v1849 = vadd.f32 %v1776, %v1848
    %1850 = vmatmul.bf16.gmra.mxu0 %v1137
    %v1851 = vpop.f32.mrf.mxu0
    %v1852 = vadd.f32 %v1779, %v1851
    %v1853 = vpop.f32.mrf.mxu0
    %v1854 = vadd.f32 %v1781, %v1853
    %1855 = vmatmul.bf16.gmra.mxu0 %v1140
    %v1856 = vpop.f32.mrf.mxu0
    %v1857 = vadd.f32 %v1784, %v1856
    %v1858 = vpop.f32.mrf.mxu0
    %v1859 = vadd.f32 %v1786, %v1858
    %1860 = vmatmul.bf16.gmra.mxu0 %v1143
    %v1861 = vpop.f32.mrf.mxu0
    %v1862 = vadd.f32 %v1789, %v1861
    %v1863 = vpop.f32.mrf.mxu0
    %v1864 = vadd.f32 %v1791, %v1863
    %1865 = vmatmul.bf16.gmra.mxu0 %v1146
    %v1866 = vpop.f32.mrf.mxu0
    %v1867 = vadd.f32 %v1794, %v1866
    %v1868 = vpop.f32.mrf.mxu0
    %v1869 = vadd.f32 %v1796, %v1868
    %1870 = vmatmul.bf16.gmra.mxu0 %v1149
    %v1871 = vpop.f32.mrf.mxu0
    %v1872 = vadd.f32 %v1799, %v1871
    %v1873 = vpop.f32.mrf.mxu0
    %v1874 = vadd.f32 %v1801, %v1873
    %1875 = vmatmul.bf16.gmra.mxu0 %v1152
    %v1876 = vpop.f32.mrf.mxu0
    %v1877 = vadd.f32 %v1804, %v1876
    %v1878 = vpop.f32.mrf.mxu0
    %v1879 = vadd.f32 %v1806, %v1878
    %1880 = vmatmul.bf16.gmra.mxu0 %v1155
    %v1881 = vpop.f32.mrf.mxu0
    %v1882 = vadd.f32 %v1809, %v1881
    %v1883 = vpop.f32.mrf.mxu0
    %v1884 = vadd.f32 %v1811, %v1883
    %1885 = vmatmul.bf16.gmra.mxu0 %v1158
    %v1886 = vpop.f32.mrf.mxu0
    %v1887 = vadd.f32 %v1814, %v1886
    %v1888 = vpop.f32.mrf.mxu0
    %1889 = vdwg.mxu0
    %1890 = vmatpush.bf16.msra.mxu0 %v985
    %1891 = vmatpush.bf16.msra.mxu0 %v983
    %1892 = vmatpush.bf16.msra.mxu0 %v981
    %1893 = vmatpush.bf16.msra.mxu0 %v979
    %1894 = vmatpush.bf16.msra.mxu0 %v977
    %1895 = vmatpush.bf16.msra.mxu0 %v975
    %1896 = vmatpush.bf16.msra.mxu0 %v973
    %1897 = vmatpush.bf16.msra.mxu0 %v971
    %1898 = vmatmul.bf16.gmra.mxu0 %v540
    %v1899 = vpop.f32.mrf.mxu0
    %v1900 = vadd.f32 0.0, %v1899
    %v1901 = vpop.f32.mrf.mxu0
    %v1902 = vadd.f32 0.0, %v1901
    %1903 = vmatmul.bf16.gmra.mxu0 %v550
    %v1904 = vpop.f32.mrf.mxu0
    %v1905 = vadd.f32 0.0, %v1904
    %v1906 = vpop.f32.mrf.mxu0
    %v1907 = vadd.f32 0.0, %v1906
    %1908 = vmatmul.bf16.gmra.mxu0 %v560
    %v1909 = vpop.f32.mrf.mxu0
    %v1910 = vadd.f32 0.0, %v1909
    %v1911 = vpop.f32.mrf.mxu0
    %v1912 = vadd.f32 0.0, %v1911
    %1913 = vmatmul.bf16.gmra.mxu0 %v570
    %v1914 = vpop.f32.mrf.mxu0
    %v1915 = vadd.f32 0.0, %v1914
    %v1916 = vpop.f32.mrf.mxu0
    %v1917 = vadd.f32 0.0, %v1916
    %1918 = vmatmul.bf16.gmra.mxu0 %v580
    %v1919 = vpop.f32.mrf.mxu0
    %v1920 = vadd.f32 0.0, %v1919
    %v1921 = vpop.f32.mrf.mxu0
    %v1922 = vadd.f32 0.0, %v1921
    %1923 = vmatmul.bf16.gmra.mxu0 %v590
    %v1924 = vpop.f32.mrf.mxu0
    %v1925 = vadd.f32 0.0, %v1924
    %v1926 = vpop.f32.mrf.mxu0
    %v1927 = vadd.f32 0.0, %v1926
    %1928 = vmatmul.bf16.gmra.mxu0 %v600
    %v1929 = vpop.f32.mrf.mxu0
    %v1930 = vadd.f32 0.0, %v1929
    %v1931 = vpop.f32.mrf.mxu0
    %v1932 = vadd.f32 0.0, %v1931
    %1933 = vmatmul.bf16.gmra.mxu0 %v610
    %v1934 = vpop.f32.mrf.mxu0
    %v1935 = vadd.f32 0.0, %v1934
    %v1936 = vpop.f32.mrf.mxu0
    %v1937 = vadd.f32 0.0, %v1936
    %1938 = vmatmul.bf16.gmra.mxu0 %v620
    %v1939 = vpop.f32.mrf.mxu0
    %v1940 = vadd.f32 0.0, %v1939
    %v1941 = vpop.f32.mrf.mxu0
    %v1942 = vadd.f32 0.0, %v1941
    %1943 = vmatmul.bf16.gmra.mxu0 %v630
    %v1944 = vpop.f32.mrf.mxu0
    %v1945 = vadd.f32 0.0, %v1944
    %v1946 = vpop.f32.mrf.mxu0
    %v1947 = vadd.f32 0.0, %v1946
    %1948 = vmatmul.bf16.gmra.mxu0 %v640
    %v1949 = vpop.f32.mrf.mxu0
    %v1950 = vadd.f32 0.0, %v1949
    %v1951 = vpop.f32.mrf.mxu0
    %v1952 = vadd.f32 0.0, %v1951
    %1953 = vmatmul.bf16.gmra.mxu0 %v650
    %v1954 = vpop.f32.mrf.mxu0
    %v1955 = vadd.f32 0.0, %v1954
    %v1956 = vpop.f32.mrf.mxu0
    %v1957 = vadd.f32 0.0, %v1956
    %1958 = vmatmul.bf16.gmra.mxu0 %v660
    %v1959 = vpop.f32.mrf.mxu0
    %v1960 = vadd.f32 0.0, %v1959
    %v1961 = vpop.f32.mrf.mxu0
    %1962 = vdwg.mxu0
    %1963 = vmatpush.bf16.msra.mxu0 %v1001
    %1964 = vmatpush.bf16.msra.mxu0 %v999
    %1965 = vmatpush.bf16.msra.mxu0 %v997
    %1966 = vmatpush.bf16.msra.mxu0 %v995
    %1967 = vmatpush.bf16.msra.mxu0 %v993
    %1968 = vmatpush.bf16.msra.mxu0 %v991
    %1969 = vmatpush.bf16.msra.mxu0 %v989
    %1970 = vmatpush.bf16.msra.mxu0 %v987
    %1971 = vmatmul.bf16.gmra.mxu0 %v541
    %v1972 = vpop.f32.mrf.mxu0
    %v1973 = vadd.f32 %v1900, %v1972
    %v1974 = vpop.f32.mrf.mxu0
    %v1975 = vadd.f32 %v1902, %v1974
    %1976 = vmatmul.bf16.gmra.mxu0 %v551
    %v1977 = vpop.f32.mrf.mxu0
    %v1978 = vadd.f32 %v1905, %v1977
    %v1979 = vpop.f32.mrf.mxu0
    %v1980 = vadd.f32 %v1907, %v1979
    %1981 = vmatmul.bf16.gmra.mxu0 %v561
    %v1982 = vpop.f32.mrf.mxu0
    %v1983 = vadd.f32 %v1910, %v1982
    %v1984 = vpop.f32.mrf.mxu0
    %v1985 = vadd.f32 %v1912, %v1984
    %1986 = vmatmul.bf16.gmra.mxu0 %v571
    %v1987 = vpop.f32.mrf.mxu0
    %v1988 = vadd.f32 %v1915, %v1987
    %v1989 = vpop.f32.mrf.mxu0
    %v1990 = vadd.f32 %v1917, %v1989
    %1991 = vmatmul.bf16.gmra.mxu0 %v581
    %v1992 = vpop.f32.mrf.mxu0
    %v1993 = vadd.f32 %v1920, %v1992
    %v1994 = vpop.f32.mrf.mxu0
    %v1995 = vadd.f32 %v1922, %v1994
    %1996 = vmatmul.bf16.gmra.mxu0 %v591
    %v1997 = vpop.f32.mrf.mxu0
    %v1998 = vadd.f32 %v1925, %v1997
    %v1999 = vpop.f32.mrf.mxu0
    %v2000 = vadd.f32 %v1927, %v1999
    %2001 = vmatmul.bf16.gmra.mxu0 %v601
    %v2002 = vpop.f32.mrf.mxu0
    %v2003 = vadd.f32 %v1930, %v2002
    %v2004 = vpop.f32.mrf.mxu0
    %v2005 = vadd.f32 %v1932, %v2004
    %2006 = vmatmul.bf16.gmra.mxu0 %v611
    %v2007 = vpop.f32.mrf.mxu0
    %v2008 = vadd.f32 %v1935, %v2007
    %v2009 = vpop.f32.mrf.mxu0
    %v2010 = vadd.f32 %v1937, %v2009
    %2011 = vmatmul.bf16.gmra.mxu0 %v621
    %v2012 = vpop.f32.mrf.mxu0
    %v2013 = vadd.f32 %v1940, %v2012
    %v2014 = vpop.f32.mrf.mxu0
    %v2015 = vadd.f32 %v1942, %v2014
    %2016 = vmatmul.bf16.gmra.mxu0 %v631
    %v2017 = vpop.f32.mrf.mxu0
    %v2018 = vadd.f32 %v1945, %v2017
    %v2019 = vpop.f32.mrf.mxu0
    %v2020 = vadd.f32 %v1947, %v2019
    %2021 = vmatmul.bf16.gmra.mxu0 %v641
    %v2022 = vpop.f32.mrf.mxu0
    %v2023 = vadd.f32 %v1950, %v2022
    %v2024 = vpop.f32.mrf.mxu0
    %v2025 = vadd.f32 %v1952, %v2024
    %2026 = vmatmul.bf16.gmra.mxu0 %v651
    %v2027 = vpop.f32.mrf.mxu0
    %v2028 = vadd.f32 %v1955, %v2027
    %v2029 = vpop.f32.mrf.mxu0
    %v2030 = vadd.f32 %v1957, %v2029
    %2031 = vmatmul.bf16.gmra.mxu0 %v661
    %v2032 = vpop.f32.mrf.mxu0
    %v2033 = vadd.f32 %v1960, %v2032
    %v2034 = vpop.f32.mrf.mxu0
    %2035 = vdwg.mxu0
    %2036 = vmatpush.bf16.msra.mxu0 %v1017
    %2037 = vmatpush.bf16.msra.mxu0 %v1015
    %2038 = vmatpush.bf16.msra.mxu0 %v1013
    %2039 = vmatpush.bf16.msra.mxu0 %v1011
    %2040 = vmatpush.bf16.msra.mxu0 %v1009
    %2041 = vmatpush.bf16.msra.mxu0 %v1007
    %2042 = vmatpush.bf16.msra.mxu0 %v1005
    %2043 = vmatpush.bf16.msra.mxu0 %v1003
    %2044 = vmatmul.bf16.gmra.mxu0 %v542
    %v2045 = vpop.f32.mrf.mxu0
    %v2046 = vadd.f32 %v1973, %v2045
    %v2047 = vpop.f32.mrf.mxu0
    %v2048 = vadd.f32 %v1975, %v2047
    %2049 = vmatmul.bf16.gmra.mxu0 %v552
    %v2050 = vpop.f32.mrf.mxu0
    %v2051 = vadd.f32 %v1978, %v2050
    %v2052 = vpop.f32.mrf.mxu0
    %v2053 = vadd.f32 %v1980, %v2052
    %2054 = vmatmul.bf16.gmra.mxu0 %v562
    %v2055 = vpop.f32.mrf.mxu0
    %v2056 = vadd.f32 %v1983, %v2055
    %v2057 = vpop.f32.mrf.mxu0
    %v2058 = vadd.f32 %v1985, %v2057
    %2059 = vmatmul.bf16.gmra.mxu0 %v572
    %v2060 = vpop.f32.mrf.mxu0
    %v2061 = vadd.f32 %v1988, %v2060
    %v2062 = vpop.f32.mrf.mxu0
    %v2063 = vadd.f32 %v1990, %v2062
    %2064 = vmatmul.bf16.gmra.mxu0 %v582
    %v2065 = vpop.f32.mrf.mxu0
    %v2066 = vadd.f32 %v1993, %v2065
    %v2067 = vpop.f32.mrf.mxu0
    %v2068 = vadd.f32 %v1995, %v2067
    %2069 = vmatmul.bf16.gmra.mxu0 %v592
    %v2070 = vpop.f32.mrf.mxu0
    %v2071 = vadd.f32 %v1998, %v2070
    %v2072 = vpop.f32.mrf.mxu0
    %v2073 = vadd.f32 %v2000, %v2072
    %2074 = vmatmul.bf16.gmra.mxu0 %v602
    %v2075 = vpop.f32.mrf.mxu0
    %v2076 = vadd.f32 %v2003, %v2075
    %v2077 = vpop.f32.mrf.mxu0
    %v2078 = vadd.f32 %v2005, %v2077
    %2079 = vmatmul.bf16.gmra.mxu0 %v612
    %v2080 = vpop.f32.mrf.mxu0
    %v2081 = vadd.f32 %v2008, %v2080
    %v2082 = vpop.f32.mrf.mxu0
    %v2083 = vadd.f32 %v2010, %v2082
    %2084 = vmatmul.bf16.gmra.mxu0 %v622
    %v2085 = vpop.f32.mrf.mxu0
    %v2086 = vadd.f32 %v2013, %v2085
    %v2087 = vpop.f32.mrf.mxu0
    %v2088 = vadd.f32 %v2015, %v2087
    %2089 = vmatmul.bf16.gmra.mxu0 %v632
    %v2090 = vpop.f32.mrf.mxu0
    %v2091 = vadd.f32 %v2018, %v2090
    %v2092 = vpop.f32.mrf.mxu0
    %v2093 = vadd.f32 %v2020, %v2092
    %2094 = vmatmul.bf16.gmra.mxu0 %v642
    %v2095 = vpop.f32.mrf.mxu0
    %v2096 = vadd.f32 %v2023, %v2095
    %v2097 = vpop.f32.mrf.mxu0
    %v2098 = vadd.f32 %v2025, %v2097
    %2099 = vmatmul.bf16.gmra.mxu0 %v652
    %v2100 = vpop.f32.mrf.mxu0
    %v2101 = vadd.f32 %v2028, %v2100
    %v2102 = vpop.f32.mrf.mxu0
    %v2103 = vadd.f32 %v2030, %v2102
    %2104 = vmatmul.bf16.gmra.mxu0 %v662
    %v2105 = vpop.f32.mrf.mxu0
    %v2106 = vadd.f32 %v2033, %v2105
    %v2107 = vpop.f32.mrf.mxu0
    %2108 = vdwg.mxu0
    %2109 = vmatpush.bf16.msra.mxu0 %v1033
    %2110 = vmatpush.bf16.msra.mxu0 %v1031
    %2111 = vmatpush.bf16.msra.mxu0 %v1029
    %2112 = vmatpush.bf16.msra.mxu0 %v1027
    %2113 = vmatpush.bf16.msra.mxu0 %v1025
    %2114 = vmatpush.bf16.msra.mxu0 %v1023
    %2115 = vmatpush.bf16.msra.mxu0 %v1021
    %2116 = vmatpush.bf16.msra.mxu0 %v1019
    %2117 = vmatmul.bf16.gmra.mxu0 %v543
    %v2118 = vpop.f32.mrf.mxu0
    %v2119 = vadd.f32 %v2046, %v2118
    %v2120 = vpop.f32.mrf.mxu0
    %v2121 = vadd.f32 %v2048, %v2120
    %2122 = vmatmul.bf16.gmra.mxu0 %v553
    %v2123 = vpop.f32.mrf.mxu0
    %v2124 = vadd.f32 %v2051, %v2123
    %v2125 = vpop.f32.mrf.mxu0
    %v2126 = vadd.f32 %v2053, %v2125
    %2127 = vmatmul.bf16.gmra.mxu0 %v563
    %v2128 = vpop.f32.mrf.mxu0
    %v2129 = vadd.f32 %v2056, %v2128
    %v2130 = vpop.f32.mrf.mxu0
    %v2131 = vadd.f32 %v2058, %v2130
    %2132 = vmatmul.bf16.gmra.mxu0 %v573
    %v2133 = vpop.f32.mrf.mxu0
    %v2134 = vadd.f32 %v2061, %v2133
    %v2135 = vpop.f32.mrf.mxu0
    %v2136 = vadd.f32 %v2063, %v2135
    %2137 = vmatmul.bf16.gmra.mxu0 %v583
    %v2138 = vpop.f32.mrf.mxu0
    %v2139 = vadd.f32 %v2066, %v2138
    %v2140 = vpop.f32.mrf.mxu0
    %v2141 = vadd.f32 %v2068, %v2140
    %2142 = vmatmul.bf16.gmra.mxu0 %v593
    %v2143 = vpop.f32.mrf.mxu0
    %v2144 = vadd.f32 %v2071, %v2143
    %v2145 = vpop.f32.mrf.mxu0
    %v2146 = vadd.f32 %v2073, %v2145
    %2147 = vmatmul.bf16.gmra.mxu0 %v603
    %v2148 = vpop.f32.mrf.mxu0
    %v2149 = vadd.f32 %v2076, %v2148
    %v2150 = vpop.f32.mrf.mxu0
    %v2151 = vadd.f32 %v2078, %v2150
    %2152 = vmatmul.bf16.gmra.mxu0 %v613
    %v2153 = vpop.f32.mrf.mxu0
    %v2154 = vadd.f32 %v2081, %v2153
    %v2155 = vpop.f32.mrf.mxu0
    %v2156 = vadd.f32 %v2083, %v2155
    %2157 = vmatmul.bf16.gmra.mxu0 %v623
    %v2158 = vpop.f32.mrf.mxu0
    %v2159 = vadd.f32 %v2086, %v2158
    %v2160 = vpop.f32.mrf.mxu0
    %v2161 = vadd.f32 %v2088, %v2160
    %2162 = vmatmul.bf16.gmra.mxu0 %v633
    %v2163 = vpop.f32.mrf.mxu0
    %v2164 = vadd.f32 %v2091, %v2163
    %v2165 = vpop.f32.mrf.mxu0
    %v2166 = vadd.f32 %v2093, %v2165
    %2167 = vmatmul.bf16.gmra.mxu0 %v643
    %v2168 = vpop.f32.mrf.mxu0
    %v2169 = vadd.f32 %v2096, %v2168
    %v2170 = vpop.f32.mrf.mxu0
    %v2171 = vadd.f32 %v2098, %v2170
    %2172 = vmatmul.bf16.gmra.mxu0 %v653
    %v2173 = vpop.f32.mrf.mxu0
    %v2174 = vadd.f32 %v2101, %v2173
    %v2175 = vpop.f32.mrf.mxu0
    %v2176 = vadd.f32 %v2103, %v2175
    %2177 = vmatmul.bf16.gmra.mxu0 %v663
    %v2178 = vpop.f32.mrf.mxu0
    %v2179 = vadd.f32 %v2106, %v2178
    %v2180 = vpop.f32.mrf.mxu0
    %2181 = vdwg.mxu0
    %2182 = vmatpush.bf16.msra.mxu0 %v1049
    %2183 = vmatpush.bf16.msra.mxu0 %v1047
    %2184 = vmatpush.bf16.msra.mxu0 %v1045
    %2185 = vmatpush.bf16.msra.mxu0 %v1043
    %2186 = vmatpush.bf16.msra.mxu0 %v1041
    %2187 = vmatpush.bf16.msra.mxu0 %v1039
    %2188 = vmatpush.bf16.msra.mxu0 %v1037
    %2189 = vmatpush.bf16.msra.mxu0 %v1035
    %2190 = vmatmul.bf16.gmra.mxu0 %v544
    %v2191 = vpop.f32.mrf.mxu0
    %v2192 = vadd.f32 %v2119, %v2191
    %v2193 = vpop.f32.mrf.mxu0
    %v2194 = vadd.f32 %v2121, %v2193
    %2195 = vmatmul.bf16.gmra.mxu0 %v554
    %v2196 = vpop.f32.mrf.mxu0
    %v2197 = vadd.f32 %v2124, %v2196
    %v2198 = vpop.f32.mrf.mxu0
    %v2199 = vadd.f32 %v2126, %v2198
    %2200 = vmatmul.bf16.gmra.mxu0 %v564
    %v2201 = vpop.f32.mrf.mxu0
    %v2202 = vadd.f32 %v2129, %v2201
    %v2203 = vpop.f32.mrf.mxu0
    %v2204 = vadd.f32 %v2131, %v2203
    %2205 = vmatmul.bf16.gmra.mxu0 %v574
    %v2206 = vpop.f32.mrf.mxu0
    %v2207 = vadd.f32 %v2134, %v2206
    %v2208 = vpop.f32.mrf.mxu0
    %v2209 = vadd.f32 %v2136, %v2208
    %2210 = vmatmul.bf16.gmra.mxu0 %v584
    %v2211 = vpop.f32.mrf.mxu0
    %v2212 = vadd.f32 %v2139, %v2211
    %v2213 = vpop.f32.mrf.mxu0
    %v2214 = vadd.f32 %v2141, %v2213
    %2215 = vmatmul.bf16.gmra.mxu0 %v594
    %v2216 = vpop.f32.mrf.mxu0
    %v2217 = vadd.f32 %v2144, %v2216
    %v2218 = vpop.f32.mrf.mxu0
    %v2219 = vadd.f32 %v2146, %v2218
    %2220 = vmatmul.bf16.gmra.mxu0 %v604
    %v2221 = vpop.f32.mrf.mxu0
    %v2222 = vadd.f32 %v2149, %v2221
    %v2223 = vpop.f32.mrf.mxu0
    %v2224 = vadd.f32 %v2151, %v2223
    %2225 = vmatmul.bf16.gmra.mxu0 %v614
    %v2226 = vpop.f32.mrf.mxu0
    %v2227 = vadd.f32 %v2154, %v2226
    %v2228 = vpop.f32.mrf.mxu0
    %v2229 = vadd.f32 %v2156, %v2228
    %2230 = vmatmul.bf16.gmra.mxu0 %v624
    %v2231 = vpop.f32.mrf.mxu0
    %v2232 = vadd.f32 %v2159, %v2231
    %v2233 = vpop.f32.mrf.mxu0
    %v2234 = vadd.f32 %v2161, %v2233
    %2235 = vmatmul.bf16.gmra.mxu0 %v634
    %v2236 = vpop.f32.mrf.mxu0
    %v2237 = vadd.f32 %v2164, %v2236
    %v2238 = vpop.f32.mrf.mxu0
    %v2239 = vadd.f32 %v2166, %v2238
    %2240 = vmatmul.bf16.gmra.mxu0 %v644
    %v2241 = vpop.f32.mrf.mxu0
    %v2242 = vadd.f32 %v2169, %v2241
    %v2243 = vpop.f32.mrf.mxu0
    %v2244 = vadd.f32 %v2171, %v2243
    %2245 = vmatmul.bf16.gmra.mxu0 %v654
    %v2246 = vpop.f32.mrf.mxu0
    %v2247 = vadd.f32 %v2174, %v2246
    %v2248 = vpop.f32.mrf.mxu0
    %v2249 = vadd.f32 %v2176, %v2248
    %2250 = vmatmul.bf16.gmra.mxu0 %v664
    %v2251 = vpop.f32.mrf.mxu0
    %v2252 = vadd.f32 %v2179, %v2251
    %v2253 = vpop.f32.mrf.mxu0
    %2254 = vdwg.mxu0
    %2255 = vmatpush.bf16.msra.mxu0 %v1065
    %2256 = vmatpush.bf16.msra.mxu0 %v1063
    %2257 = vmatpush.bf16.msra.mxu0 %v1061
    %2258 = vmatpush.bf16.msra.mxu0 %v1059
    %2259 = vmatpush.bf16.msra.mxu0 %v1057
    %2260 = vmatpush.bf16.msra.mxu0 %v1055
    %2261 = vmatpush.bf16.msra.mxu0 %v1053
    %2262 = vmatpush.bf16.msra.mxu0 %v1051
    %2263 = vmatmul.bf16.gmra.mxu0 %v545
    %v2264 = vpop.f32.mrf.mxu0
    %v2265 = vadd.f32 %v2192, %v2264
    %v2266 = vpop.f32.mrf.mxu0
    %v2267 = vadd.f32 %v2194, %v2266
    %2268 = vmatmul.bf16.gmra.mxu0 %v555
    %v2269 = vpop.f32.mrf.mxu0
    %v2270 = vadd.f32 %v2197, %v2269
    %v2271 = vpop.f32.mrf.mxu0
    %v2272 = vadd.f32 %v2199, %v2271
    %2273 = vmatmul.bf16.gmra.mxu0 %v565
    %v2274 = vpop.f32.mrf.mxu0
    %v2275 = vadd.f32 %v2202, %v2274
    %v2276 = vpop.f32.mrf.mxu0
    %v2277 = vadd.f32 %v2204, %v2276
    %2278 = vmatmul.bf16.gmra.mxu0 %v575
    %v2279 = vpop.f32.mrf.mxu0
    %v2280 = vadd.f32 %v2207, %v2279
    %v2281 = vpop.f32.mrf.mxu0
    %v2282 = vadd.f32 %v2209, %v2281
    %2283 = vmatmul.bf16.gmra.mxu0 %v585
    %v2284 = vpop.f32.mrf.mxu0
    %v2285 = vadd.f32 %v2212, %v2284
    %v2286 = vpop.f32.mrf.mxu0
    %v2287 = vadd.f32 %v2214, %v2286
    %2288 = vmatmul.bf16.gmra.mxu0 %v595
    %v2289 = vpop.f32.mrf.mxu0
    %v2290 = vadd.f32 %v2217, %v2289
    %v2291 = vpop.f32.mrf.mxu0
    %v2292 = vadd.f32 %v2219, %v2291
    %2293 = vmatmul.bf16.gmra.mxu0 %v605
    %v2294 = vpop.f32.mrf.mxu0
    %v2295 = vadd.f32 %v2222, %v2294
    %v2296 = vpop.f32.mrf.mxu0
    %v2297 = vadd.f32 %v2224, %v2296
    %2298 = vmatmul.bf16.gmra.mxu0 %v615
    %v2299 = vpop.f32.mrf.mxu0
    %v2300 = vadd.f32 %v2227, %v2299
    %v2301 = vpop.f32.mrf.mxu0
    %v2302 = vadd.f32 %v2229, %v2301
    %2303 = vmatmul.bf16.gmra.mxu0 %v625
    %v2304 = vpop.f32.mrf.mxu0
    %v2305 = vadd.f32 %v2232, %v2304
    %v2306 = vpop.f32.mrf.mxu0
    %v2307 = vadd.f32 %v2234, %v2306
    %2308 = vmatmul.bf16.gmra.mxu0 %v635
    %v2309 = vpop.f32.mrf.mxu0
    %v2310 = vadd.f32 %v2237, %v2309
    %v2311 = vpop.f32.mrf.mxu0
    %v2312 = vadd.f32 %v2239, %v2311
    %2313 = vmatmul.bf16.gmra.mxu0 %v645
    %v2314 = vpop.f32.mrf.mxu0
    %v2315 = vadd.f32 %v2242, %v2314
    %v2316 = vpop.f32.mrf.mxu0
    %v2317 = vadd.f32 %v2244, %v2316
    %2318 = vmatmul.bf16.gmra.mxu0 %v655
    %v2319 = vpop.f32.mrf.mxu0
    %v2320 = vadd.f32 %v2247, %v2319
    %v2321 = vpop.f32.mrf.mxu0
    %v2322 = vadd.f32 %v2249, %v2321
    %2323 = vmatmul.bf16.gmra.mxu0 %v665
    %v2324 = vpop.f32.mrf.mxu0
    %v2325 = vadd.f32 %v2252, %v2324
    %v2326 = vpop.f32.mrf.mxu0
    %2327 = vdwg.mxu0
    %2328 = vmatpush.bf16.msra.mxu0 %v1081
    %2329 = vmatpush.bf16.msra.mxu0 %v1079
    %2330 = vmatpush.bf16.msra.mxu0 %v1077
    %2331 = vmatpush.bf16.msra.mxu0 %v1075
    %2332 = vmatpush.bf16.msra.mxu0 %v1073
    %2333 = vmatpush.bf16.msra.mxu0 %v1071
    %2334 = vmatpush.bf16.msra.mxu0 %v1069
    %2335 = vmatpush.bf16.msra.mxu0 %v1067
    %2336 = vmatmul.bf16.gmra.mxu0 %v546
    %v2337 = vpop.f32.mrf.mxu0
    %v2338 = vadd.f32 %v2265, %v2337
    %v2339 = vpop.f32.mrf.mxu0
    %v2340 = vadd.f32 %v2267, %v2339
    %2341 = vmatmul.bf16.gmra.mxu0 %v556
    %v2342 = vpop.f32.mrf.mxu0
    %v2343 = vadd.f32 %v2270, %v2342
    %v2344 = vpop.f32.mrf.mxu0
    %v2345 = vadd.f32 %v2272, %v2344
    %2346 = vmatmul.bf16.gmra.mxu0 %v566
    %v2347 = vpop.f32.mrf.mxu0
    %v2348 = vadd.f32 %v2275, %v2347
    %v2349 = vpop.f32.mrf.mxu0
    %v2350 = vadd.f32 %v2277, %v2349
    %2351 = vmatmul.bf16.gmra.mxu0 %v576
    %v2352 = vpop.f32.mrf.mxu0
    %v2353 = vadd.f32 %v2280, %v2352
    %v2354 = vpop.f32.mrf.mxu0
    %v2355 = vadd.f32 %v2282, %v2354
    %2356 = vmatmul.bf16.gmra.mxu0 %v586
    %v2357 = vpop.f32.mrf.mxu0
    %v2358 = vadd.f32 %v2285, %v2357
    %v2359 = vpop.f32.mrf.mxu0
    %v2360 = vadd.f32 %v2287, %v2359
    %2361 = vmatmul.bf16.gmra.mxu0 %v596
    %v2362 = vpop.f32.mrf.mxu0
    %v2363 = vadd.f32 %v2290, %v2362
    %v2364 = vpop.f32.mrf.mxu0
    %v2365 = vadd.f32 %v2292, %v2364
    %2366 = vmatmul.bf16.gmra.mxu0 %v606
    %v2367 = vpop.f32.mrf.mxu0
    %v2368 = vadd.f32 %v2295, %v2367
    %v2369 = vpop.f32.mrf.mxu0
    %v2370 = vadd.f32 %v2297, %v2369
    %2371 = vmatmul.bf16.gmra.mxu0 %v616
    %v2372 = vpop.f32.mrf.mxu0
    %v2373 = vadd.f32 %v2300, %v2372
    %v2374 = vpop.f32.mrf.mxu0
    %v2375 = vadd.f32 %v2302, %v2374
    %2376 = vmatmul.bf16.gmra.mxu0 %v626
    %v2377 = vpop.f32.mrf.mxu0
    %v2378 = vadd.f32 %v2305, %v2377
    %v2379 = vpop.f32.mrf.mxu0
    %v2380 = vadd.f32 %v2307, %v2379
    %2381 = vmatmul.bf16.gmra.mxu0 %v636
    %v2382 = vpop.f32.mrf.mxu0
    %v2383 = vadd.f32 %v2310, %v2382
    %v2384 = vpop.f32.mrf.mxu0
    %v2385 = vadd.f32 %v2312, %v2384
    %2386 = vmatmul.bf16.gmra.mxu0 %v646
    %v2387 = vpop.f32.mrf.mxu0
    %v2388 = vadd.f32 %v2315, %v2387
    %v2389 = vpop.f32.mrf.mxu0
    %v2390 = vadd.f32 %v2317, %v2389
    %2391 = vmatmul.bf16.gmra.mxu0 %v656
    %v2392 = vpop.f32.mrf.mxu0
    %v2393 = vadd.f32 %v2320, %v2392
    %v2394 = vpop.f32.mrf.mxu0
    %v2395 = vadd.f32 %v2322, %v2394
    %2396 = vmatmul.bf16.gmra.mxu0 %v666
    %v2397 = vpop.f32.mrf.mxu0
    %v2398 = vadd.f32 %v2325, %v2397
    %v2399 = vpop.f32.mrf.mxu0
    %2400 = vdwg.mxu0
    %2401 = vmatpush.bf16.msra.mxu0 %v1097
    %2402 = vmatpush.bf16.msra.mxu0 %v1095
    %2403 = vmatpush.bf16.msra.mxu0 %v1093
    %2404 = vmatpush.bf16.msra.mxu0 %v1091
    %2405 = vmatpush.bf16.msra.mxu0 %v1089
    %2406 = vmatpush.bf16.msra.mxu0 %v1087
    %2407 = vmatpush.bf16.msra.mxu0 %v1085
    %2408 = vmatpush.bf16.msra.mxu0 %v1083
    %2409 = vmatmul.bf16.gmra.mxu0 %v547
    %v2410 = vpop.f32.mrf.mxu0
    %v2411 = vadd.f32 %v2338, %v2410
    %v2412 = vpop.f32.mrf.mxu0
    %v2413 = vadd.f32 %v2340, %v2412
    %2414 = vmatmul.bf16.gmra.mxu0 %v557
    %v2415 = vpop.f32.mrf.mxu0
    %v2416 = vadd.f32 %v2343, %v2415
    %v2417 = vpop.f32.mrf.mxu0
    %v2418 = vadd.f32 %v2345, %v2417
    %2419 = vmatmul.bf16.gmra.mxu0 %v567
    %v2420 = vpop.f32.mrf.mxu0
    %v2421 = vadd.f32 %v2348, %v2420
    %v2422 = vpop.f32.mrf.mxu0
    %v2423 = vadd.f32 %v2350, %v2422
    %2424 = vmatmul.bf16.gmra.mxu0 %v577
    %v2425 = vpop.f32.mrf.mxu0
    %v2426 = vadd.f32 %v2353, %v2425
    %v2427 = vpop.f32.mrf.mxu0
    %v2428 = vadd.f32 %v2355, %v2427
    %2429 = vmatmul.bf16.gmra.mxu0 %v587
    %v2430 = vpop.f32.mrf.mxu0
    %v2431 = vadd.f32 %v2358, %v2430
    %v2432 = vpop.f32.mrf.mxu0
    %v2433 = vadd.f32 %v2360, %v2432
    %2434 = vmatmul.bf16.gmra.mxu0 %v597
    %v2435 = vpop.f32.mrf.mxu0
    %v2436 = vadd.f32 %v2363, %v2435
    %v2437 = vpop.f32.mrf.mxu0
    %v2438 = vadd.f32 %v2365, %v2437
    %2439 = vmatmul.bf16.gmra.mxu0 %v607
    %v2440 = vpop.f32.mrf.mxu0
    %v2441 = vadd.f32 %v2368, %v2440
    %v2442 = vpop.f32.mrf.mxu0
    %v2443 = vadd.f32 %v2370, %v2442
    %2444 = vmatmul.bf16.gmra.mxu0 %v617
    %v2445 = vpop.f32.mrf.mxu0
    %v2446 = vadd.f32 %v2373, %v2445
    %v2447 = vpop.f32.mrf.mxu0
    %v2448 = vadd.f32 %v2375, %v2447
    %2449 = vmatmul.bf16.gmra.mxu0 %v627
    %v2450 = vpop.f32.mrf.mxu0
    %v2451 = vadd.f32 %v2378, %v2450
    %v2452 = vpop.f32.mrf.mxu0
    %v2453 = vadd.f32 %v2380, %v2452
    %2454 = vmatmul.bf16.gmra.mxu0 %v637
    %v2455 = vpop.f32.mrf.mxu0
    %v2456 = vadd.f32 %v2383, %v2455
    %v2457 = vpop.f32.mrf.mxu0
    %v2458 = vadd.f32 %v2385, %v2457
    %2459 = vmatmul.bf16.gmra.mxu0 %v647
    %v2460 = vpop.f32.mrf.mxu0
    %v2461 = vadd.f32 %v2388, %v2460
    %v2462 = vpop.f32.mrf.mxu0
    %v2463 = vadd.f32 %v2390, %v2462
    %2464 = vmatmul.bf16.gmra.mxu0 %v657
    %v2465 = vpop.f32.mrf.mxu0
    %v2466 = vadd.f32 %v2393, %v2465
    %v2467 = vpop.f32.mrf.mxu0
    %v2468 = vadd.f32 %v2395, %v2467
    %2469 = vmatmul.bf16.gmra.mxu0 %v667
    %v2470 = vpop.f32.mrf.mxu0
    %v2471 = vadd.f32 %v2398, %v2470
    %v2472 = vpop.f32.mrf.mxu0
    %2473 = vdwg.mxu0
    %2474 = vmatpush.bf16.msra.mxu0 %v1113
    %2475 = vmatpush.bf16.msra.mxu0 %v1111
    %2476 = vmatpush.bf16.msra.mxu0 %v1109
    %2477 = vmatpush.bf16.msra.mxu0 %v1107
    %2478 = vmatpush.bf16.msra.mxu0 %v1105
    %2479 = vmatpush.bf16.msra.mxu0 %v1103
    %2480 = vmatpush.bf16.msra.mxu0 %v1101
    %2481 = vmatpush.bf16.msra.mxu0 %v1099
    %2482 = vmatmul.bf16.gmra.mxu0 %v548
    %v2483 = vpop.f32.mrf.mxu0
    %v2484 = vadd.f32 %v2411, %v2483
    %v2485 = vpop.f32.mrf.mxu0
    %v2486 = vadd.f32 %v2413, %v2485
    %2487 = vmatmul.bf16.gmra.mxu0 %v558
    %v2488 = vpop.f32.mrf.mxu0
    %v2489 = vadd.f32 %v2416, %v2488
    %v2490 = vpop.f32.mrf.mxu0
    %v2491 = vadd.f32 %v2418, %v2490
    %2492 = vmatmul.bf16.gmra.mxu0 %v568
    %v2493 = vpop.f32.mrf.mxu0
    %v2494 = vadd.f32 %v2421, %v2493
    %v2495 = vpop.f32.mrf.mxu0
    %v2496 = vadd.f32 %v2423, %v2495
    %2497 = vmatmul.bf16.gmra.mxu0 %v578
    %v2498 = vpop.f32.mrf.mxu0
    %v2499 = vadd.f32 %v2426, %v2498
    %v2500 = vpop.f32.mrf.mxu0
    %v2501 = vadd.f32 %v2428, %v2500
    %2502 = vmatmul.bf16.gmra.mxu0 %v588
    %v2503 = vpop.f32.mrf.mxu0
    %v2504 = vadd.f32 %v2431, %v2503
    %v2505 = vpop.f32.mrf.mxu0
    %v2506 = vadd.f32 %v2433, %v2505
    %2507 = vmatmul.bf16.gmra.mxu0 %v598
    %v2508 = vpop.f32.mrf.mxu0
    %v2509 = vadd.f32 %v2436, %v2508
    %v2510 = vpop.f32.mrf.mxu0
    %v2511 = vadd.f32 %v2438, %v2510
    %2512 = vmatmul.bf16.gmra.mxu0 %v608
    %v2513 = vpop.f32.mrf.mxu0
    %v2514 = vadd.f32 %v2441, %v2513
    %v2515 = vpop.f32.mrf.mxu0
    %v2516 = vadd.f32 %v2443, %v2515
    %2517 = vmatmul.bf16.gmra.mxu0 %v618
    %v2518 = vpop.f32.mrf.mxu0
    %v2519 = vadd.f32 %v2446, %v2518
    %v2520 = vpop.f32.mrf.mxu0
    %v2521 = vadd.f32 %v2448, %v2520
    %2522 = vmatmul.bf16.gmra.mxu0 %v628
    %v2523 = vpop.f32.mrf.mxu0
    %v2524 = vadd.f32 %v2451, %v2523
    %v2525 = vpop.f32.mrf.mxu0
    %v2526 = vadd.f32 %v2453, %v2525
    %2527 = vmatmul.bf16.gmra.mxu0 %v638
    %v2528 = vpop.f32.mrf.mxu0
    %v2529 = vadd.f32 %v2456, %v2528
    %v2530 = vpop.f32.mrf.mxu0
    %v2531 = vadd.f32 %v2458, %v2530
    %2532 = vmatmul.bf16.gmra.mxu0 %v648
    %v2533 = vpop.f32.mrf.mxu0
    %v2534 = vadd.f32 %v2461, %v2533
    %v2535 = vpop.f32.mrf.mxu0
    %v2536 = vadd.f32 %v2463, %v2535
    %2537 = vmatmul.bf16.gmra.mxu0 %v658
    %v2538 = vpop.f32.mrf.mxu0
    %v2539 = vadd.f32 %v2466, %v2538
    %v2540 = vpop.f32.mrf.mxu0
    %v2541 = vadd.f32 %v2468, %v2540
    %2542 = vmatmul.bf16.gmra.mxu0 %v668
    %v2543 = vpop.f32.mrf.mxu0
    %v2544 = vadd.f32 %v2471, %v2543
    %v2545 = vpop.f32.mrf.mxu0
    %2546 = vdwg.mxu0
    %2547 = vmatpush.bf16.msra.mxu0 0
    %2548 = vmatpush.bf16.msra.mxu0 0
    %2549 = vmatpush.bf16.msra.mxu0 0
    %2550 = vmatpush.bf16.msra.mxu0 0
    %2551 = vmatpush.bf16.msra.mxu0 0
    %2552 = vmatpush.bf16.msra.mxu0 %v1119
    %2553 = vmatpush.bf16.msra.mxu0 %v1117
    %2554 = vmatpush.bf16.msra.mxu0 %v1115
    %2555 = vmatmul.bf16.gmra.mxu0 %v1122
    %v2556 = vpop.f32.mrf.mxu0
    %v2557 = vadd.f32 %v2484, %v2556
    %v2558 = vpop.f32.mrf.mxu0
    %v2559 = vadd.f32 %v2486, %v2558
    %2560 = vmatmul.bf16.gmra.mxu0 %v1125
    %v2561 = vpop.f32.mrf.mxu0
    %v2562 = vadd.f32 %v2489, %v2561
    %v2563 = vpop.f32.mrf.mxu0
    %v2564 = vadd.f32 %v2491, %v2563
    %2565 = vmatmul.bf16.gmra.mxu0 %v1128
    %v2566 = vpop.f32.mrf.mxu0
    %v2567 = vadd.f32 %v2494, %v2566
    %v2568 = vpop.f32.mrf.mxu0
    %v2569 = vadd.f32 %v2496, %v2568
    %2570 = vmatmul.bf16.gmra.mxu0 %v1131
    %v2571 = vpop.f32.mrf.mxu0
    %v2572 = vadd.f32 %v2499, %v2571
    %v2573 = vpop.f32.mrf.mxu0
    %v2574 = vadd.f32 %v2501, %v2573
    %2575 = vmatmul.bf16.gmra.mxu0 %v1134
    %v2576 = vpop.f32.mrf.mxu0
    %v2577 = vadd.f32 %v2504, %v2576
    %v2578 = vpop.f32.mrf.mxu0
    %v2579 = vadd.f32 %v2506, %v2578
    %2580 = vmatmul.bf16.gmra.mxu0 %v1137
    %v2581 = vpop.f32.mrf.mxu0
    %v2582 = vadd.f32 %v2509, %v2581
    %v2583 = vpop.f32.mrf.mxu0
    %v2584 = vadd.f32 %v2511, %v2583
    %2585 = vmatmul.bf16.gmra.mxu0 %v1140
    %v2586 = vpop.f32.mrf.mxu0
    %v2587 = vadd.f32 %v2514, %v2586
    %v2588 = vpop.f32.mrf.mxu0
    %v2589 = vadd.f32 %v2516, %v2588
    %2590 = vmatmul.bf16.gmra.mxu0 %v1143
    %v2591 = vpop.f32.mrf.mxu0
    %v2592 = vadd.f32 %v2519, %v2591
    %v2593 = vpop.f32.mrf.mxu0
    %v2594 = vadd.f32 %v2521, %v2593
    %2595 = vmatmul.bf16.gmra.mxu0 %v1146
    %v2596 = vpop.f32.mrf.mxu0
    %v2597 = vadd.f32 %v2524, %v2596
    %v2598 = vpop.f32.mrf.mxu0
    %v2599 = vadd.f32 %v2526, %v2598
    %2600 = vmatmul.bf16.gmra.mxu0 %v1149
    %v2601 = vpop.f32.mrf.mxu0
    %v2602 = vadd.f32 %v2529, %v2601
    %v2603 = vpop.f32.mrf.mxu0
    %v2604 = vadd.f32 %v2531, %v2603
    %2605 = vmatmul.bf16.gmra.mxu0 %v1152
    %v2606 = vpop.f32.mrf.mxu0
    %v2607 = vadd.f32 %v2534, %v2606
    %v2608 = vpop.f32.mrf.mxu0
    %v2609 = vadd.f32 %v2536, %v2608
    %2610 = vmatmul.bf16.gmra.mxu0 %v1155
    %v2611 = vpop.f32.mrf.mxu0
    %v2612 = vadd.f32 %v2539, %v2611
    %v2613 = vpop.f32.mrf.mxu0
    %v2614 = vadd.f32 %v2541, %v2613
    %2615 = vmatmul.bf16.gmra.mxu0 %v1158
    %v2616 = vpop.f32.mrf.mxu0
    %v2617 = vadd.f32 %v2544, %v2616
    %v2618 = vpop.f32.mrf.mxu0
    %2619 = vdwg.mxu0
    %2620 = vst [vmem:[#allocation2] sm:$0xff] %v1827
    %vm2621 = vcmask 556032
    %2622 = vst.msk [vmem:[#allocation2 + $0x8] sm:$0xff] %vm2621, %v2557
    %2623 = vst [vmem:[#allocation2 + $0x10] sm:$0xff] %v1829
    %2624 = vst.msk [vmem:[#allocation2 + $0x18] sm:$0xff] %vm2621, %v2559
    %2625 = vst [vmem:[#allocation2 + $0x20] sm:$0xff] %v1832
    %2626 = vst.msk [vmem:[#allocation2 + $0x28] sm:$0xff] %vm2621, %v2562
    %2627 = vst [vmem:[#allocation2 + $0x30] sm:$0xff] %v1834
    %2628 = vst.msk [vmem:[#allocation2 + $0x38] sm:$0xff] %vm2621, %v2564
    %2629 = vst [vmem:[#allocation2 + $0x40] sm:$0xff] %v1837
    %2630 = vst.msk [vmem:[#allocation2 + $0x48] sm:$0xff] %vm2621, %v2567
    %2631 = vst [vmem:[#allocation2 + $0x50] sm:$0xff] %v1839
    %2632 = vst.msk [vmem:[#allocation2 + $0x58] sm:$0xff] %vm2621, %v2569
    %2633 = vst [vmem:[#allocation2 + $0x60] sm:$0xff] %v1842
    %2634 = vst.msk [vmem:[#allocation2 + $0x68] sm:$0xff] %vm2621, %v2572
    %2635 = vst [vmem:[#allocation2 + $0x70] sm:$0xff] %v1844
    %2636 = vst.msk [vmem:[#allocation2 + $0x78] sm:$0xff] %vm2621, %v2574
    %2637 = vst [vmem:[#allocation2 + $0x80] sm:$0xff] %v1847
    %2638 = vst.msk [vmem:[#allocation2 + $0x88] sm:$0xff] %vm2621, %v2577
    %2639 = vst [vmem:[#allocation2 + $0x90] sm:$0xff] %v1849
    %2640 = vst.msk [vmem:[#allocation2 + $0x98] sm:$0xff] %vm2621, %v2579
    %2641 = vst [vmem:[#allocation2 + $0xa0] sm:$0xff] %v1852
    %2642 = vst.msk [vmem:[#allocation2 + $0xa8] sm:$0xff] %vm2621, %v2582
    %2643 = vst [vmem:[#allocation2 + $0xb0] sm:$0xff] %v1854
    %2644 = vst.msk [vmem:[#allocation2 + $0xb8] sm:$0xff] %vm2621, %v2584
    %2645 = vst [vmem:[#allocation2 + $0xc0] sm:$0xff] %v1857
    %2646 = vst.msk [vmem:[#allocation2 + $0xc8] sm:$0xff] %vm2621, %v2587
    %2647 = vst [vmem:[#allocation2 + $0xd0] sm:$0xff] %v1859
    %2648 = vst.msk [vmem:[#allocation2 + $0xd8] sm:$0xff] %vm2621, %v2589
    %2649 = vst [vmem:[#allocation2 + $0xe0] sm:$0xff] %v1862
    %2650 = vst.msk [vmem:[#allocation2 + $0xe8] sm:$0xff] %vm2621, %v2592
    %2651 = vst [vmem:[#allocation2 + $0xf0] sm:$0xff] %v1864
    %2652 = vst.msk [vmem:[#allocation2 + $0xf8] sm:$0xff] %vm2621, %v2594
    %2653 = vst [vmem:[#allocation2 + $0x100] sm:$0xff] %v1867
    %2654 = vst.msk [vmem:[#allocation2 + $0x108] sm:$0xff] %vm2621, %v2597
    %2655 = vst [vmem:[#allocation2 + $0x110] sm:$0xff] %v1869
    %2656 = vst.msk [vmem:[#allocation2 + $0x118] sm:$0xff] %vm2621, %v2599
    %2657 = vst [vmem:[#allocation2 + $0x120] sm:$0xff] %v1872
    %2658 = vst.msk [vmem:[#allocation2 + $0x128] sm:$0xff] %vm2621, %v2602
    %2659 = vst [vmem:[#allocation2 + $0x130] sm:$0xff] %v1874
    %2660 = vst.msk [vmem:[#allocation2 + $0x138] sm:$0xff] %vm2621, %v2604
    %2661 = vst [vmem:[#allocation2 + $0x140] sm:$0xff] %v1877
    %2662 = vst.msk [vmem:[#allocation2 + $0x148] sm:$0xff] %vm2621, %v2607
    %2663 = vst [vmem:[#allocation2 + $0x150] sm:$0xff] %v1879
    %2664 = vst.msk [vmem:[#allocation2 + $0x158] sm:$0xff] %vm2621, %v2609
    %2665 = vst [vmem:[#allocation2 + $0x160] sm:$0xff] %v1882
    %2666 = vst.msk [vmem:[#allocation2 + $0x168] sm:$0xff] %vm2621, %v2612
    %2667 = vst [vmem:[#allocation2 + $0x170] sm:$0xff] %v1884
    %2668 = vst.msk [vmem:[#allocation2 + $0x178] sm:$0xff] %vm2621, %v2614
    %2669 = vst [vmem:[#allocation2 + $0x180] sm:$0xff] %v1887
    %2670 = vst.msk [vmem:[#allocation2 + $0x188] sm:$0xff] %vm2621, %v2617
    // Predicated region
    $region14: #{tpu_custom_call.1} parent=1 // pred_check
      _
    $region15: #{tpu_custom_call.1} parent=1 // pred_check_branch
      %2672 = sbr.rel (0) target = $region17
    $region16: #{tpu_custom_call.1} parent=1 // pred_region
      %2674 = vsyncadd [#allocation3], 0
      %s2675 = sshll.u32 [#allocation2], 4
      %s2676 = int_to_ptr.vmem [resolvable:$true] %s2675
      %s2677 = sshll.u32 %s3, 4
      %s2678 = int_to_ptr.hbm [resolvable:$true] %s2677
      %2683 = dma.vmem_to_hbm [thread:$0]  %s2676, 6400, %s2678, [#allocation3], 256, 256, 16
    $region17: #{tpu_custom_call.1} parent=1 // pred_fallthru
      _
    // Predicated region
    $region18: #{tpu_custom_call.1} parent=1 // pred_check
      _
    $region19: #{tpu_custom_call.1} parent=1 // pred_check_branch
      %2685 = sbr.rel (0) target = $region21
    $region20: #{tpu_custom_call.1} parent=1 // pred_region
      %2687 = dma.done [#allocation3], 6400
    $region21: #{tpu_custom_call.1} parent=1 // pred_fallthru
      _
    %2688 = vsyncpa [#allocation3], 1

</llo_original>
